<compile_context>
chip_gen: v5e
topology: v5e:2x2
jax: 0.10.0
libtpu: 0.0.40
codegen_flags: <defaults>
</compile_context>

<pallas_src>
import functools

import jax
import jax.numpy as jnp
from jax import lax
from jax.experimental import pallas as pl
from jax.experimental.pallas import tpu as pltpu


# ------------------------------ Pallas kernel -------------------------------

def _basic_transform_kernel(x_ref, wa_ref, sha_ref, wb_ref, shb_ref, o_ref,
                            xpad_ref, ypad_ref, *, T, H, W, tk, Cin, Cout):
    pt = tk // 2
    WCin = W * Cin
    WCout = W * Cout

    # Zero the padded scratch slabs once; every later write only touches the
    # interior, so the zero borders persist across grid iterations.
    @pl.when(pl.program_id(0) == 0)
    def _init():
        xpad_ref[...] = jnp.zeros_like(xpad_ref)
        ypad_ref[...] = jnp.zeros_like(ypad_ref)

    # ---- input, zero-padded in T and H inside VMEM (W padding is folded into
    #      the banded weights), no HBM-side jnp.pad copy. ----
    xpad_ref[pt:pt + T, 1:1 + H, :] = x_ref[0]

    # ---- conv a (Tx3x3) + BN_a (scale pre-folded into wa) + ReLU ----
    # wa_ref[kt, kh] is a (W*Cin, W*Cout) block-banded matrix that applies the
    # three kw taps and the W zero padding as one MXU-friendly matmul.
    acc_a = jnp.zeros((T * H, WCout), jnp.float32)
    for kt in range(tk):
        for kh in range(3):
            lhs = xpad_ref[kt:kt + T, kh:kh + H, :].reshape(T * H, WCin)
            acc_a += jnp.dot(lhs, wa_ref[kt, kh],
                             preferred_element_type=jnp.float32)
    a_act = jnp.maximum(acc_a + sha_ref[...], 0.0)     # BN shift + ReLU

    # ---- stage-a result, zero-padded in H only (conv b is 1x3x3, no T halo) --
    ypad_ref[:, 1:1 + H, :] = a_act.reshape(T, H, WCout)

    # ---- conv b (1x3x3) + BN_b (scale pre-folded into wb) ----
    acc_b = jnp.zeros((T * H, WCout), jnp.float32)
    for kh in range(3):
        lhs = ypad_ref[:, kh:kh + H, :].reshape(T * H, WCout)
        acc_b += jnp.dot(lhs, wb_ref[kh], preferred_element_type=jnp.float32)

    # Lane-dense output: last dim is W*Cout (=128 here), full-width stores.
    o_ref[...] = (acc_b + shb_ref[...]).reshape(1, T * H, WCout)


# --------------------------------- wrapper ----------------------------------

def basic_transform_forward(x_ncthw, kparams, *, temp_kernel_size=3,
                            stride=1, dilation=1):
    if stride != 1 or dilation != 1:
        # TODO(synk): strided / dilated variants.
        raise NotImplementedError("only stride=1, dilation=1 is implemented")
    N, Cin, T, H, W = x_ncthw.shape
    tk = temp_kernel_size
    pt = tk // 2
    WCin = W * Cin
    WCout = kparams["wa_big"].shape[-1]
    Cout = WCout // W

    # NCTHW -> (N, T, H, W*Cin): channels-last with W folded onto the lane dim.
    x = jnp.transpose(x_ncthw, (0, 2, 3, 4, 1)).astype(jnp.float32)
    x = x.reshape(N, T, H, WCin)

    kernel = functools.partial(_basic_transform_kernel,
                               T=T, H=H, W=W, tk=tk, Cin=Cin, Cout=Cout)

    out = pl.pallas_call(
        kernel,
        out_shape=jax.ShapeDtypeStruct((N, T * H, WCout), jnp.float32),
        grid_spec=pltpu.PrefetchScalarGridSpec(
            num_scalar_prefetch=0,
            grid=(N,),
            in_specs=[
                pl.BlockSpec((1, T, H, WCin), lambda n: (n, 0, 0, 0)),      # x
                pl.BlockSpec((tk, 3, WCin, WCout), lambda n: (0, 0, 0, 0)),  # wa
                pl.BlockSpec((1, WCout), lambda n: (0, 0)),                  # shift a
                pl.BlockSpec((3, WCout, WCout), lambda n: (0, 0, 0)),        # wb
                pl.BlockSpec((1, WCout), lambda n: (0, 0)),                  # shift b
            ],
            out_specs=pl.BlockSpec((1, T * H, WCout), lambda n: (n, 0, 0)),
            scratch_shapes=[
                pltpu.VMEM((T + 2 * pt, H + 2, WCin), jnp.float32),   # padded x
                pltpu.VMEM((T, H + 2, WCout), jnp.float32),           # padded act
            ],
        ),
        compiler_params=pltpu.CompilerParams(dimension_semantics=("parallel",)),
    )(x, kparams["wa_big"], kparams["sha_big"],
      kparams["wb_big"], kparams["shb_big"])

    out = out.reshape(N, T, H, W, Cout)
    return jnp.transpose(out, (0, 4, 1, 2, 3))        # back to NCTHW


# ------------------------ parameters & host-side prep ------------------------

def make_params(key, Cin, Cout, tk, eps):
    ks = jax.random.split(key, 10)

    def nrm(k, shape, s=0.1):
        return (jax.random.normal(k, shape) * s).astype(jnp.float32)

    def uni(k, shape, lo, hi):
        return jax.random.uniform(k, shape, minval=lo, maxval=hi).astype(jnp.float32)

    p = {}
    p["w_a"] = nrm(ks[0], (Cout, Cin, tk, 3, 3))       # OIDHW
    p["gamma_a"], p["beta_a"] = uni(ks[1], (Cout,), 0.8, 1.2), nrm(ks[2], (Cout,), 0.1)
    p["mean_a"], p["var_a"] = nrm(ks[3], (Cout,), 0.1), uni(ks[4], (Cout,), 0.5, 1.5)
    p["w_b"] = nrm(ks[5], (Cout, Cout, 1, 3, 3))       # OIDHW
    p["gamma_b"], p["beta_b"] = uni(ks[6], (Cout,), 0.8, 1.2), nrm(ks[7], (Cout,), 0.1)
    p["mean_b"], p["var_b"] = nrm(ks[8], (Cout,), 0.1), uni(ks[9], (Cout,), 0.5, 1.5)
    return p


def _bn_scale_shift(gamma, beta, mean, var, eps):
    scale = gamma / jnp.sqrt(var + eps)
    return scale, beta - mean * scale


def _banded_over_w(w_oidhw, W):
    """(Cout, Cin, KT, KH, KW) -> (KT, KH, W*Cin, W*Cout) block-banded matrices
    that apply the KW taps (with zero padding KW//2 in W) as one matmul over
    the lane-flattened (w, channel) axis."""
    Cout, Cin, KT, KH, KW = w_oidhw.shape
    wt = jnp.transpose(w_oidhw, (2, 3, 4, 1, 0))       # (KT, KH, KW, Cin, Cout)
    big = jnp.zeros((KT, KH, W, Cin, W, Cout), jnp.float32)
    for kw in range(KW):
        for w in range(W):
            w_in = w + kw - (KW // 2)
            if 0 <= w_in < W:
                big = big.at[:, :, w_in, :, w, :].set(wt[:, :, kw])
    return big.reshape(KT, KH, W * Cin, W * Cout)


def prepare_kernel_params(p, W, eps):
    """Fold inference-mode BN scales into the conv weights and build the
    banded (lane-dense) weight matrices consumed by the fused kernel."""
    # TODO(synk): training-mode BatchNorm batch statistics.
    scale_a, shift_a = _bn_scale_shift(p["gamma_a"], p["beta_a"],
                                       p["mean_a"], p["var_a"], eps)
    scale_b, shift_b = _bn_scale_shift(p["gamma_b"], p["beta_b"],
                                       p["mean_b"], p["var_b"], eps)
    wa = p["w_a"] * scale_a[:, None, None, None, None]
    wb = p["w_b"] * scale_b[:, None, None, None, None]
    Cout = p["w_a"].shape[0]
    return {
        "wa_big": _banded_over_w(wa, W),               # (tk, 3, W*Cin, W*Cout)
        "wb_big": _banded_over_w(wb, W)[0],            # (3, W*Cout, W*Cout)
        "sha_big": jnp.tile(shift_a, W).reshape(1, W * Cout),
        "shb_big": jnp.tile(shift_b, W).reshape(1, W * Cout),
    }


# ------------------------------ pure-JAX reference ---------------------------

def reference_forward(x, p, eps, tk):
    """Mirror of the PyTorch (eval-mode) BasicTransform forward, NCTHW."""
    hp = lax.Precision.HIGHEST

    def bn(y, g, b, m, v):
        sh = (1, -1, 1, 1, 1)
        return ((y - m.reshape(sh)) / jnp.sqrt(v.reshape(sh) + eps)
                * g.reshape(sh) + b.reshape(sh))

    dn = lambda lhs, rhs: lax.conv_dimension_numbers(
        lhs.shape, rhs.shape, ("NCDHW", "OIDHW", "NCDHW"))

    pt = tk // 2
    y = lax.conv_general_dilated(x, p["w_a"], (1, 1, 1),
                                 ((pt, pt), (1, 1), (1, 1)),
                                 dimension_numbers=dn(x, p["w_a"]), precision=hp)
    y = jnp.maximum(bn(y, p["gamma_a"], p["beta_a"], p["mean_a"], p["var_a"]), 0.0)
    y = lax.conv_general_dilated(y, p["w_b"], (1, 1, 1),
                                 ((0, 0), (1, 1), (1, 1)),
                                 dimension_numbers=dn(y, p["w_b"]), precision=hp)
    return bn(y, p["gamma_b"], p["beta_b"], p["mean_b"], p["var_b"])


# ----------------------------------- main ------------------------------------

if __name__ == "__main__":
    N, Cin, Cout = 2, 16, 16
    T, H, W = 4, 8, 8          # W*Cin = W*Cout = 128 -> lane-dense everywhere
    tk = 3
    eps = 1e-5

    key = jax.random.PRNGKey(0)
    kx, kp = jax.random.split(key)
    x = jax.random.normal(kx, (N, Cin, T, H, W), dtype=jnp.float32)

    params = make_params(kp, Cin, Cout, tk, eps)
    kparams = prepare_kernel_params(params, W, eps)

    out = jax.block_until_ready(
        basic_transform_forward(x, kparams, temp_kernel_size=tk))
    ref = jax.block_until_ready(reference_forward(x, params, eps, tk))

    assert out.shape == (N, Cout, T, H, W), out.shape
    if not jnp.allclose(out, ref, atol=2e-3, rtol=2e-3):
        raise AssertionError(
            f"mismatch, max abs diff = {float(jnp.max(jnp.abs(out - ref)))}")
    print("KERNEL_OK")
</pallas_src>

<mosaic_0001>
module attributes {stable_mosaic.version = 11 : i64} {
  func.func @_basic_transform_kernel(%arg0: i32, %arg1: memref<1x4x8x128xf32, #tpu.memory_space<vmem>>, %arg2: memref<3x3x128x128xf32, #tpu.memory_space<vmem>>, %arg3: memref<1x128xf32, #tpu.memory_space<vmem>>, %arg4: memref<3x128x128xf32, #tpu.memory_space<vmem>>, %arg5: memref<1x128xf32, #tpu.memory_space<vmem>>, %arg6: memref<1x32x128xf32, #tpu.memory_space<vmem>>, %arg7: memref<6x10x128xf32, #tpu.memory_space<vmem>>, %arg8: memref<4x10x128xf32, #tpu.memory_space<vmem>>) attributes {dimension_semantics = [#tpu.dimension_semantics<parallel>], iteration_bounds = array<i64: 2>, scalar_prefetch = 0 : i64, scratch_operands = 2 : i64, tpu.core_type = #tpu.core_type<tc>, window_params = [{transform_indices = @transform_0, window_bounds = array<i64: 1, 4, 8, 128>}, {pipeline_mode = #tpu.pipeline_mode<synchronous>, transform_indices = @transform_1, window_bounds = array<i64: 3, 3, 128, 128>}, {pipeline_mode = #tpu.pipeline_mode<synchronous>, transform_indices = @transform_2, window_bounds = array<i64: 1, 128>}, {pipeline_mode = #tpu.pipeline_mode<synchronous>, transform_indices = @transform_3, window_bounds = array<i64: 3, 128, 128>}, {pipeline_mode = #tpu.pipeline_mode<synchronous>, transform_indices = @transform_4, window_bounds = array<i64: 1, 128>}, {transform_indices = @transform_5, window_bounds = array<i64: 1, 32, 128>}]} {
    %c0_i32 = arith.constant 0 : i32
    %0 = arith.cmpi eq, %arg0, %c0_i32 : i32
    %1 = arith.extui %0 : i1 to i32
    %c0_i32_0 = arith.constant 0 : i32
    %2 = arith.cmpi ne, %1, %c0_i32_0 : i32
    scf.if %2 {
      %cst_110 = arith.constant 0.000000e+00 : f32
      %92 = vector.broadcast %cst_110 : f32 to vector<6x10x128xf32>
      %c0_111 = arith.constant 0 : index
      %c0_112 = arith.constant 0 : index
      %c0_113 = arith.constant 0 : index
      %93 = vector.load %arg7[%c0_111, %c0_112, %c0_113] : memref<6x10x128xf32, #tpu.memory_space<vmem>>, vector<6x10x128xf32>
      tpu.vector_store %arg7[%c0_111, %c0_112, %c0_113], %92 {strides = array<i32>} : memref<6x10x128xf32, #tpu.memory_space<vmem>>, vector<6x10x128xf32>,
      %cst_114 = arith.constant 0.000000e+00 : f32
      %94 = vector.broadcast %cst_114 : f32 to vector<4x10x128xf32>
      %c0_115 = arith.constant 0 : index
      %c0_116 = arith.constant 0 : index
      %c0_117 = arith.constant 0 : index
      %95 = vector.load %arg8[%c0_115, %c0_116, %c0_117] : memref<4x10x128xf32, #tpu.memory_space<vmem>>, vector<4x10x128xf32>
      tpu.vector_store %arg8[%c0_115, %c0_116, %c0_117], %94 {strides = array<i32>} : memref<4x10x128xf32, #tpu.memory_space<vmem>>, vector<4x10x128xf32>,
    } else {
    }
    %c0 = arith.constant 0 : index
    %c0_1 = arith.constant 0 : index
    %c0_2 = arith.constant 0 : index
    %c0_3 = arith.constant 0 : index
    %3 = vector.load %arg1[%c0, %c0_1, %c0_2, %c0_3] : memref<1x4x8x128xf32, #tpu.memory_space<vmem>>, vector<1x4x8x128xf32>
    %4 = vector.shape_cast %3 : vector<1x4x8x128xf32> to vector<4x8x128xf32>
    %c1 = arith.constant 1 : index
    %c1_4 = arith.constant 1 : index
    %c0_5 = arith.constant 0 : index
    %5 = vector.load %arg7[%c1, %c1_4, %c0_5] : memref<6x10x128xf32, #tpu.memory_space<vmem>>, vector<4x8x128xf32>
    tpu.vector_store %arg7[%c1, %c1_4, %c0_5], %4 {strides = array<i32>} : memref<6x10x128xf32, #tpu.memory_space<vmem>>, vector<4x8x128xf32>,
    %cst = arith.constant 0.000000e+00 : f32
    %6 = vector.broadcast %cst : f32 to vector<32x128xf32>
    %c0_6 = arith.constant 0 : index
    %c0_7 = arith.constant 0 : index
    %c0_8 = arith.constant 0 : index
    %7 = vector.load %arg7[%c0_6, %c0_7, %c0_8] : memref<6x10x128xf32, #tpu.memory_space<vmem>>, vector<4x8x128xf32>
    %8 = vector.shape_cast %7 : vector<4x8x128xf32> to vector<32x128xf32>
    %c0_9 = arith.constant 0 : index
    %c0_10 = arith.constant 0 : index
    %c0_11 = arith.constant 0 : index
    %c0_12 = arith.constant 0 : index
    %9 = vector.load %arg2[%c0_9, %c0_10, %c0_11, %c0_12] : memref<3x3x128x128xf32, #tpu.memory_space<vmem>>, vector<1x1x128x128xf32>
    %10 = vector.shape_cast %9 : vector<1x1x128x128xf32> to vector<128x128xf32>
    %cst_13 = arith.constant dense<0.000000e+00> : vector<32x128xf32>
    %11 = tpu.matmul %8, %10, %cst_13 {dimension_numbers = #tpu.dot_dimension_numbers<[1], [0], [0], [1], [0, 0, 1, 1], [], []>} : vector<32x128xf32>, vector<128x128xf32>, vector<32x128xf32> -> vector<32x128xf32>
    %12 = arith.addf %6, %11 : vector<32x128xf32>
    %c0_14 = arith.constant 0 : index
    %c1_15 = arith.constant 1 : index
    %c0_16 = arith.constant 0 : index
    %13 = vector.load %arg7[%c0_14, %c1_15, %c0_16] : memref<6x10x128xf32, #tpu.memory_space<vmem>>, vector<4x8x128xf32>
    %14 = vector.shape_cast %13 : vector<4x8x128xf32> to vector<32x128xf32>
    %c0_17 = arith.constant 0 : index
    %c1_18 = arith.constant 1 : index
    %c0_19 = arith.constant 0 : index
    %c0_20 = arith.constant 0 : index
    %15 = vector.load %arg2[%c0_17, %c1_18, %c0_19, %c0_20] : memref<3x3x128x128xf32, #tpu.memory_space<vmem>>, vector<1x1x128x128xf32>
    %16 = vector.shape_cast %15 : vector<1x1x128x128xf32> to vector<128x128xf32>
    %cst_21 = arith.constant dense<0.000000e+00> : vector<32x128xf32>
    %17 = tpu.matmul %14, %16, %cst_21 {dimension_numbers = #tpu.dot_dimension_numbers<[1], [0], [0], [1], [0, 0, 1, 1], [], []>} : vector<32x128xf32>, vector<128x128xf32>, vector<32x128xf32> -> vector<32x128xf32>
    %18 = arith.addf %12, %17 : vector<32x128xf32>
    %c0_22 = arith.constant 0 : index
    %c2 = arith.constant 2 : index
    %c0_23 = arith.constant 0 : index
    %19 = vector.load %arg7[%c0_22, %c2, %c0_23] : memref<6x10x128xf32, #tpu.memory_space<vmem>>, vector<4x8x128xf32>
    %20 = vector.shape_cast %19 : vector<4x8x128xf32> to vector<32x128xf32>
    %c0_24 = arith.constant 0 : index
    %c2_25 = arith.constant 2 : index
    %c0_26 = arith.constant 0 : index
    %c0_27 = arith.constant 0 : index
    %21 = vector.load %arg2[%c0_24, %c2_25, %c0_26, %c0_27] : memref<3x3x128x128xf32, #tpu.memory_space<vmem>>, vector<1x1x128x128xf32>
    %22 = vector.shape_cast %21 : vector<1x1x128x128xf32> to vector<128x128xf32>
    %cst_28 = arith.constant dense<0.000000e+00> : vector<32x128xf32>
    %23 = tpu.matmul %20, %22, %cst_28 {dimension_numbers = #tpu.dot_dimension_numbers<[1], [0], [0], [1], [0, 0, 1, 1], [], []>} : vector<32x128xf32>, vector<128x128xf32>, vector<32x128xf32> -> vector<32x128xf32>
    %24 = arith.addf %18, %23 : vector<32x128xf32>
    %c1_29 = arith.constant 1 : index
    %c0_30 = arith.constant 0 : index
    %c0_31 = arith.constant 0 : index
    %25 = vector.load %arg7[%c1_29, %c0_30, %c0_31] : memref<6x10x128xf32, #tpu.memory_space<vmem>>, vector<4x8x128xf32>
    %26 = vector.shape_cast %25 : vector<4x8x128xf32> to vector<32x128xf32>
    %c1_32 = arith.constant 1 : index
    %c0_33 = arith.constant 0 : index
    %c0_34 = arith.constant 0 : index
    %c0_35 = arith.constant 0 : index
    %27 = vector.load %arg2[%c1_32, %c0_33, %c0_34, %c0_35] : memref<3x3x128x128xf32, #tpu.memory_space<vmem>>, vector<1x1x128x128xf32>
    %28 = vector.shape_cast %27 : vector<1x1x128x128xf32> to vector<128x128xf32>
    %cst_36 = arith.constant dense<0.000000e+00> : vector<32x128xf32>
    %29 = tpu.matmul %26, %28, %cst_36 {dimension_numbers = #tpu.dot_dimension_numbers<[1], [0], [0], [1], [0, 0, 1, 1], [], []>} : vector<32x128xf32>, vector<128x128xf32>, vector<32x128xf32> -> vector<32x128xf32>
    %30 = arith.addf %24, %29 : vector<32x128xf32>
    %c1_37 = arith.constant 1 : index
    %c1_38 = arith.constant 1 : index
    %c0_39 = arith.constant 0 : index
    %31 = vector.load %arg7[%c1_37, %c1_38, %c0_39] : memref<6x10x128xf32, #tpu.memory_space<vmem>>, vector<4x8x128xf32>
    %32 = vector.shape_cast %31 : vector<4x8x128xf32> to vector<32x128xf32>
    %c1_40 = arith.constant 1 : index
    %c1_41 = arith.constant 1 : index
    %c0_42 = arith.constant 0 : index
    %c0_43 = arith.constant 0 : index
    %33 = vector.load %arg2[%c1_40, %c1_41, %c0_42, %c0_43] : memref<3x3x128x128xf32, #tpu.memory_space<vmem>>, vector<1x1x128x128xf32>
    %34 = vector.shape_cast %33 : vector<1x1x128x128xf32> to vector<128x128xf32>
    %cst_44 = arith.constant dense<0.000000e+00> : vector<32x128xf32>
    %35 = tpu.matmul %32, %34, %cst_44 {dimension_numbers = #tpu.dot_dimension_numbers<[1], [0], [0], [1], [0, 0, 1, 1], [], []>} : vector<32x128xf32>, vector<128x128xf32>, vector<32x128xf32> -> vector<32x128xf32>
    %36 = arith.addf %30, %35 : vector<32x128xf32>
    %c1_45 = arith.constant 1 : index
    %c2_46 = arith.constant 2 : index
    %c0_47 = arith.constant 0 : index
    %37 = vector.load %arg7[%c1_45, %c2_46, %c0_47] : memref<6x10x128xf32, #tpu.memory_space<vmem>>, vector<4x8x128xf32>
    %38 = vector.shape_cast %37 : vector<4x8x128xf32> to vector<32x128xf32>
    %c1_48 = arith.constant 1 : index
    %c2_49 = arith.constant 2 : index
    %c0_50 = arith.constant 0 : index
    %c0_51 = arith.constant 0 : index
    %39 = vector.load %arg2[%c1_48, %c2_49, %c0_50, %c0_51] : memref<3x3x128x128xf32, #tpu.memory_space<vmem>>, vector<1x1x128x128xf32>
    %40 = vector.shape_cast %39 : vector<1x1x128x128xf32> to vector<128x128xf32>
    %cst_52 = arith.constant dense<0.000000e+00> : vector<32x128xf32>
    %41 = tpu.matmul %38, %40, %cst_52 {dimension_numbers = #tpu.dot_dimension_numbers<[1], [0], [0], [1], [0, 0, 1, 1], [], []>} : vector<32x128xf32>, vector<128x128xf32>, vector<32x128xf32> -> vector<32x128xf32>
    %42 = arith.addf %36, %41 : vector<32x128xf32>
    %c2_53 = arith.constant 2 : index
    %c0_54 = arith.constant 0 : index
    %c0_55 = arith.constant 0 : index
    %43 = vector.load %arg7[%c2_53, %c0_54, %c0_55] : memref<6x10x128xf32, #tpu.memory_space<vmem>>, vector<4x8x128xf32>
    %44 = vector.shape_cast %43 : vector<4x8x128xf32> to vector<32x128xf32>
    %c2_56 = arith.constant 2 : index
    %c0_57 = arith.constant 0 : index
    %c0_58 = arith.constant 0 : index
    %c0_59 = arith.constant 0 : index
    %45 = vector.load %arg2[%c2_56, %c0_57, %c0_58, %c0_59] : memref<3x3x128x128xf32, #tpu.memory_space<vmem>>, vector<1x1x128x128xf32>
    %46 = vector.shape_cast %45 : vector<1x1x128x128xf32> to vector<128x128xf32>
    %cst_60 = arith.constant dense<0.000000e+00> : vector<32x128xf32>
    %47 = tpu.matmul %44, %46, %cst_60 {dimension_numbers = #tpu.dot_dimension_numbers<[1], [0], [0], [1], [0, 0, 1, 1], [], []>} : vector<32x128xf32>, vector<128x128xf32>, vector<32x128xf32> -> vector<32x128xf32>
    %48 = arith.addf %42, %47 : vector<32x128xf32>
    %c2_61 = arith.constant 2 : index
    %c1_62 = arith.constant 1 : index
    %c0_63 = arith.constant 0 : index
    %49 = vector.load %arg7[%c2_61, %c1_62, %c0_63] : memref<6x10x128xf32, #tpu.memory_space<vmem>>, vector<4x8x128xf32>
    %50 = vector.shape_cast %49 : vector<4x8x128xf32> to vector<32x128xf32>
    %c2_64 = arith.constant 2 : index
    %c1_65 = arith.constant 1 : index
    %c0_66 = arith.constant 0 : index
    %c0_67 = arith.constant 0 : index
    %51 = vector.load %arg2[%c2_64, %c1_65, %c0_66, %c0_67] : memref<3x3x128x128xf32, #tpu.memory_space<vmem>>, vector<1x1x128x128xf32>
    %52 = vector.shape_cast %51 : vector<1x1x128x128xf32> to vector<128x128xf32>
    %cst_68 = arith.constant dense<0.000000e+00> : vector<32x128xf32>
    %53 = tpu.matmul %50, %52, %cst_68 {dimension_numbers = #tpu.dot_dimension_numbers<[1], [0], [0], [1], [0, 0, 1, 1], [], []>} : vector<32x128xf32>, vector<128x128xf32>, vector<32x128xf32> -> vector<32x128xf32>
    %54 = arith.addf %48, %53 : vector<32x128xf32>
    %c2_69 = arith.constant 2 : index
    %c2_70 = arith.constant 2 : index
    %c0_71 = arith.constant 0 : index
    %55 = vector.load %arg7[%c2_69, %c2_70, %c0_71] : memref<6x10x128xf32, #tpu.memory_space<vmem>>, vector<4x8x128xf32>
    %56 = vector.shape_cast %55 : vector<4x8x128xf32> to vector<32x128xf32>
    %c2_72 = arith.constant 2 : index
    %c2_73 = arith.constant 2 : index
    %c0_74 = arith.constant 0 : index
    %c0_75 = arith.constant 0 : index
    %57 = vector.load %arg2[%c2_72, %c2_73, %c0_74, %c0_75] : memref<3x3x128x128xf32, #tpu.memory_space<vmem>>, vector<1x1x128x128xf32>
    %58 = vector.shape_cast %57 : vector<1x1x128x128xf32> to vector<128x128xf32>
    %cst_76 = arith.constant dense<0.000000e+00> : vector<32x128xf32>
    %59 = tpu.matmul %56, %58, %cst_76 {dimension_numbers = #tpu.dot_dimension_numbers<[1], [0], [0], [1], [0, 0, 1, 1], [], []>} : vector<32x128xf32>, vector<128x128xf32>, vector<32x128xf32> -> vector<32x128xf32>
    %60 = arith.addf %54, %59 : vector<32x128xf32>
    %c0_77 = arith.constant 0 : index
    %c0_78 = arith.constant 0 : index
    %61 = vector.load %arg3[%c0_77, %c0_78] : memref<1x128xf32, #tpu.memory_space<vmem>>, vector<1x128xf32>
    %62 = vector.broadcast %61 : vector<1x128xf32> to vector<32x128xf32>
    %63 = arith.addf %60, %62 : vector<32x128xf32>
    %cst_79 = arith.constant 0.000000e+00 : f32
    %64 = vector.broadcast %cst_79 : f32 to vector<32x128xf32>
    %65 = arith.maximumf %63, %64 : vector<32x128xf32>
    %66 = vector.shape_cast %65 : vector<32x128xf32> to vector<4x8x128xf32>
    %c0_80 = arith.constant 0 : index
    %c1_81 = arith.constant 1 : index
    %c0_82 = arith.constant 0 : index
    %67 = vector.load %arg8[%c0_80, %c1_81, %c0_82] : memref<4x10x128xf32, #tpu.memory_space<vmem>>, vector<4x8x128xf32>
    tpu.vector_store %arg8[%c0_80, %c1_81, %c0_82], %66 {strides = array<i32>} : memref<4x10x128xf32, #tpu.memory_space<vmem>>, vector<4x8x128xf32>,
    %cst_83 = arith.constant 0.000000e+00 : f32
    %68 = vector.broadcast %cst_83 : f32 to vector<32x128xf32>
    %c0_84 = arith.constant 0 : index
    %c0_85 = arith.constant 0 : index
    %c0_86 = arith.constant 0 : index
    %69 = vector.load %arg8[%c0_84, %c0_85, %c0_86] : memref<4x10x128xf32, #tpu.memory_space<vmem>>, vector<4x8x128xf32>
    %70 = vector.shape_cast %69 : vector<4x8x128xf32> to vector<32x128xf32>
    %c0_87 = arith.constant 0 : index
    %c0_88 = arith.constant 0 : index
    %c0_89 = arith.constant 0 : index
    %71 = vector.load %arg4[%c0_87, %c0_88, %c0_89] : memref<3x128x128xf32, #tpu.memory_space<vmem>>, vector<1x128x128xf32>
    %72 = vector.shape_cast %71 : vector<1x128x128xf32> to vector<128x128xf32>
    %cst_90 = arith.constant dense<0.000000e+00> : vector<32x128xf32>
    %73 = tpu.matmul %70, %72, %cst_90 {dimension_numbers = #tpu.dot_dimension_numbers<[1], [0], [0], [1], [0, 0, 1, 1], [], []>} : vector<32x128xf32>, vector<128x128xf32>, vector<32x128xf32> -> vector<32x128xf32>
    %74 = arith.addf %68, %73 : vector<32x128xf32>
    %c0_91 = arith.constant 0 : index
    %c1_92 = arith.constant 1 : index
    %c0_93 = arith.constant 0 : index
    %75 = vector.load %arg8[%c0_91, %c1_92, %c0_93] : memref<4x10x128xf32, #tpu.memory_space<vmem>>, vector<4x8x128xf32>
    %76 = vector.shape_cast %75 : vector<4x8x128xf32> to vector<32x128xf32>
    %c1_94 = arith.constant 1 : index
    %c0_95 = arith.constant 0 : index
    %c0_96 = arith.constant 0 : index
    %77 = vector.load %arg4[%c1_94, %c0_95, %c0_96] : memref<3x128x128xf32, #tpu.memory_space<vmem>>, vector<1x128x128xf32>
    %78 = vector.shape_cast %77 : vector<1x128x128xf32> to vector<128x128xf32>
    %cst_97 = arith.constant dense<0.000000e+00> : vector<32x128xf32>
    %79 = tpu.matmul %76, %78, %cst_97 {dimension_numbers = #tpu.dot_dimension_numbers<[1], [0], [0], [1], [0, 0, 1, 1], [], []>} : vector<32x128xf32>, vector<128x128xf32>, vector<32x128xf32> -> vector<32x128xf32>
    %80 = arith.addf %74, %79 : vector<32x128xf32>
    %c0_98 = arith.constant 0 : index
    %c2_99 = arith.constant 2 : index
    %c0_100 = arith.constant 0 : index
    %81 = vector.load %arg8[%c0_98, %c2_99, %c0_100] : memref<4x10x128xf32, #tpu.memory_space<vmem>>, vector<4x8x128xf32>
    %82 = vector.shape_cast %81 : vector<4x8x128xf32> to vector<32x128xf32>
    %c2_101 = arith.constant 2 : index
    %c0_102 = arith.constant 0 : index
    %c0_103 = arith.constant 0 : index
    %83 = vector.load %arg4[%c2_101, %c0_102, %c0_103] : memref<3x128x128xf32, #tpu.memory_space<vmem>>, vector<1x128x128xf32>
    %84 = vector.shape_cast %83 : vector<1x128x128xf32> to vector<128x128xf32>
    %cst_104 = arith.constant dense<0.000000e+00> : vector<32x128xf32>
    %85 = tpu.matmul %82, %84, %cst_104 {dimension_numbers = #tpu.dot_dimension_numbers<[1], [0], [0], [1], [0, 0, 1, 1], [], []>} : vector<32x128xf32>, vector<128x128xf32>, vector<32x128xf32> -> vector<32x128xf32>
    %86 = arith.addf %80, %85 : vector<32x128xf32>
    %c0_105 = arith.constant 0 : index
    %c0_106 = arith.constant 0 : index
    %87 = vector.load %arg5[%c0_105, %c0_106] : memref<1x128xf32, #tpu.memory_space<vmem>>, vector<1x128xf32>
    %88 = vector.broadcast %87 : vector<1x128xf32> to vector<32x128xf32>
    %89 = arith.addf %86, %88 : vector<32x128xf32>
    %90 = vector.shape_cast %89 : vector<32x128xf32> to vector<1x32x128xf32>
    %c0_107 = arith.constant 0 : index
    %c0_108 = arith.constant 0 : index
    %c0_109 = arith.constant 0 : index
    %91 = vector.load %arg6[%c0_107, %c0_108, %c0_109] : memref<1x32x128xf32, #tpu.memory_space<vmem>>, vector<1x32x128xf32>
    tpu.vector_store %arg6[%c0_107, %c0_108, %c0_109], %90 {strides = array<i32>} : memref<1x32x128xf32, #tpu.memory_space<vmem>>, vector<1x32x128xf32>,
    return
  }
  func.func @transform_0(%arg0: i32) -> (i32, i32, i32, i32) {
    %c0_i32 = arith.constant 0 : i32
    %c0_i32_0 = arith.constant 0 : i32
    %c0_i32_1 = arith.constant 0 : i32
    %c0_i32_2 = arith.constant 0 : i32
    return %arg0, %c0_i32, %c0_i32_0, %c0_i32_1 : i32, i32, i32, i32
  }
  func.func @transform_1(%arg0: i32) -> (i32, i32, i32, i32) {
    %c0_i32 = arith.constant 0 : i32
    %c0_i32_0 = arith.constant 0 : i32
    %c0_i32_1 = arith.constant 0 : i32
    %c0_i32_2 = arith.constant 0 : i32
    %c0_i32_3 = arith.constant 0 : i32
    return %c0_i32, %c0_i32_0, %c0_i32_1, %c0_i32_2 : i32, i32, i32, i32
  }
  func.func @transform_2(%arg0: i32) -> (i32, i32) {
    %c0_i32 = arith.constant 0 : i32
    %c0_i32_0 = arith.constant 0 : i32
    %c0_i32_1 = arith.constant 0 : i32
    return %c0_i32, %c0_i32_0 : i32, i32
  }
  func.func @transform_3(%arg0: i32) -> (i32, i32, i32) {
    %c0_i32 = arith.constant 0 : i32
    %c0_i32_0 = arith.constant 0 : i32
    %c0_i32_1 = arith.constant 0 : i32
    %c0_i32_2 = arith.constant 0 : i32
    return %c0_i32, %c0_i32_0, %c0_i32_1 : i32, i32, i32
  }
  func.func @transform_4(%arg0: i32) -> (i32, i32) {
    %c0_i32 = arith.constant 0 : i32
    %c0_i32_0 = arith.constant 0 : i32
    %c0_i32_1 = arith.constant 0 : i32
    return %c0_i32, %c0_i32_0 : i32, i32
  }
  func.func @transform_5(%arg0: i32) -> (i32, i32, i32) {
    %c0_i32 = arith.constant 0 : i32
    %c0_i32_0 = arith.constant 0 : i32
    %c0_i32_1 = arith.constant 0 : i32
    return %arg0, %c0_i32, %c0_i32_0 : i32, i32, i32
  }
}

</mosaic_0001>

<llo_original>
// kernel: tpu_custom_call.1
$region0: #{tpu_custom_call.1}
  #allocation0 [shape = 'u32[]', space=smem, size = 0x4, offset = 0x4, fixed_abs, tag = 'smem constant byte address 0x4 - core index']
  #allocation1 [shape = 'u32[72,128]{1,0:T(1,128)}', space=vmem, size = 0x9000, scoped, tag = 'internal scratch']
  #allocation2 [shape = 'f32[6,10,128]{2,1,0:T(8,128)}', space=vmem, size = 0xc000, scoped, tag = 'scratch operand']
  #allocation3 [shape = 'f32[4,10,128]{2,1,0:T(8,128)}', space=vmem, size = 0x8000, scoped, tag = 'scratch operand']
  %s0 = inlined_call_operand.hbm [shape: f32[2,4,8,128], index: 0, kind: input, shape index: {}]
  %s1 = inlined_call_operand.hbm [shape: f32[3,3,128,128], index: 1, kind: input, shape index: {}]
  %s2 = inlined_call_operand.vmem [shape: f32[1,128], index: 2, kind: input, shape index: {}]
  %s3 = inlined_call_operand.hbm [shape: f32[3,128,128], index: 3, kind: input, shape index: {}]
  %s4 = inlined_call_operand.vmem [shape: f32[1,128], index: 4, kind: input, shape index: {}]
  %s5 = inlined_call_operand.hbm [shape: f32[2,32,128], index: 5, kind: output, shape index: {}]
  %s6 = sld [smem:[#allocation0]]
  $region69: #{tpu_custom_call.1} parent=0
    _
  %s8 = ssub.s32 1, %s6
  %s9 = scalar_select 0, %s8, %s6
  $region1: #{tpu_custom_call.1} parent=0
    #allocation4 [shape = 'u8[32768]{0}', space=vmem, size = 0x8000, scoped, tag = 'input window, operand 0']
    #allocation5 [shape = 's32[2]{0}', space=sflag, size = 0x8, scoped, tag = 'scoped memory for tpu_custom_call.1']
    #allocation6 [shape = 's32[2]{0}', space=sflag, size = 0x8, scoped, tag = 'scoped memory for tpu_custom_call.1']
    #allocation7 [shape = 'u8[589824]{0}', space=vmem, size = 0x90000, scoped, tag = 'input window, operand 1, single buffered']
    #allocation8 [shape = 's32[1]{0}', space=sflag, size = 0x4, scoped, tag = 'scoped memory for tpu_custom_call.1']
    #allocation9 [shape = 'u8[196608]{0}', space=vmem, size = 0x30000, scoped, tag = 'input window, operand 3, single buffered']
    #allocation10 [shape = 'u8[32768]{0}', space=vmem, size = 0x8000, scoped, tag = 'output window, operand 0']
    %10 = vsyncpa [#allocation5], 0
    %s11 = scalar_lea.sflag [#allocation5], 1
    %12 = vsyncpa %s11, 0
    %13 = vsyncpa [#allocation8], 0
    %14 = vsyncpa [#allocation6], 0
    %s15 = scalar_lea.sflag [#allocation6], 1
    %16 = vsyncpa %s15, 0
    loop: start=0, step=1, limit=4
    $region2: #{tpu_custom_call.1} parent=1 // loop_pre_header
      _
    $region3: #{tpu_custom_call.1} parent=1 // loop_header
      %s18 = sphi 0, %s22
      %p19 = scmp.ge.s32.totalorder %s18, 4
      %s28 = sphi 0, %s30
      %s31 = sphi 0, %s28
      %s32 = sphi 0, %s31
      %s48 = sphi 0, %s32
      %s52 = sphi 0, %s52
      %s54 = sphi 0, %s52
      %s55 = sphi 0, %s54
      %s69 = sphi 0, %s55
      %s73 = sphi 0, %s73
      %s75 = sphi 0, %s73
      %s76 = sphi 0, %s75
      %s90 = sphi 0, %s76
      %s94 = sphi 0, %s94
      %s96 = sphi 0, %s94
      %s97 = sphi 0, %s96
      %s111 = sphi 0, %s97
      %s115 = sphi 0, %s115
      %s117 = sphi 0, %s115
      %s118 = sphi 0, %s117
      %s132 = sphi 0, %s118
      %s138 = sphi 0, %s140
      %s141 = sphi 0, %s138
      %s142 = sphi 0, %s141
      %s158 = sphi 0, %s142
    $region4: #{tpu_custom_call.1} parent=1 // loop_header_branch
      %21 = sbr.rel (%p19) target = $region8
    $region5: #{tpu_custom_call.1} parent=1 // loop_body
      %s23 = ssub.s32 %s18, 1
      %s24 = ssub.s32 %s18, 2
      %s25 = sadd.s32 %s18, 1
      %s26 = ssub.s32 %s18, %s25
      %p27 = scmp.eq.s32.totalorder %s26, 0
      %s29 = sadd.s32 %s28, 1
      %s30 = scalar_select %p27, %s28, %s29
      %p33 = pneg %p27
      %p34 = scmp.eq.s32.totalorder %s18, 1
      %p35 = por %p33, %p34
      %p36 = scmp.ne.s32.totalorder %s28, %s31
      %p37 = scmp.eq.s32.totalorder %s18, 0
      %p38 = por %p36, %p37
      %p39 = scmp.ne.s32.totalorder %s28, %s31
      %p40 = scmp.eq.s32.totalorder %s23, 1
      %p41 = por %p39, %p40
      %p42 = scmp.ne.s32.totalorder %s31, %s32
      %p43 = scmp.eq.s32.totalorder %s23, 0
      %p44 = por %p42, %p43
      %p45 = scmp.ne.s32.totalorder %s31, %s32
      %p46 = scmp.eq.s32.totalorder %s24, 1
      %p47 = por %p45, %p46
      %p49 = scmp.ne.s32.totalorder %s32, %s48
      %p50 = scmp.eq.s32.totalorder %s24, 0
      %p51 = por %p49, %p50
      %s53 = sadd.s32 %s52, 1
      %p56 = scmp.eq.s32.totalorder %s18, 1
      %p57 = scmp.ne.s32.totalorder %s52, %s54
      %p58 = scmp.eq.s32.totalorder %s18, 0
      %p59 = por %p57, %p58
      %p60 = scmp.ne.s32.totalorder %s52, %s54
      %p61 = scmp.eq.s32.totalorder %s23, 1
      %p62 = por %p60, %p61
      %p63 = scmp.ne.s32.totalorder %s54, %s55
      %p64 = scmp.eq.s32.totalorder %s23, 0
      %p65 = por %p63, %p64
      %p66 = scmp.ne.s32.totalorder %s54, %s55
      %p67 = scmp.eq.s32.totalorder %s24, 1
      %p68 = por %p66, %p67
      %p70 = scmp.ne.s32.totalorder %s55, %s69
      %p71 = scmp.eq.s32.totalorder %s24, 0
      %p72 = por %p70, %p71
      %s74 = sadd.s32 %s73, 1
      %p77 = scmp.eq.s32.totalorder %s18, 1
      %p78 = scmp.ne.s32.totalorder %s73, %s75
      %p79 = scmp.eq.s32.totalorder %s18, 0
      %p80 = por %p78, %p79
      %p81 = scmp.ne.s32.totalorder %s73, %s75
      %p82 = scmp.eq.s32.totalorder %s23, 1
      %p83 = por %p81, %p82
      %p84 = scmp.ne.s32.totalorder %s75, %s76
      %p85 = scmp.eq.s32.totalorder %s23, 0
      %p86 = por %p84, %p85
      %p87 = scmp.ne.s32.totalorder %s75, %s76
      %p88 = scmp.eq.s32.totalorder %s24, 1
      %p89 = por %p87, %p88
      %p91 = scmp.ne.s32.totalorder %s76, %s90
      %p92 = scmp.eq.s32.totalorder %s24, 0
      %p93 = por %p91, %p92
      %s95 = sadd.s32 %s94, 1
      %p98 = scmp.eq.s32.totalorder %s18, 1
      %p99 = scmp.ne.s32.totalorder %s94, %s96
      %p100 = scmp.eq.s32.totalorder %s18, 0
      %p101 = por %p99, %p100
      %p102 = scmp.ne.s32.totalorder %s94, %s96
      %p103 = scmp.eq.s32.totalorder %s23, 1
      %p104 = por %p102, %p103
      %p105 = scmp.ne.s32.totalorder %s96, %s97
      %p106 = scmp.eq.s32.totalorder %s23, 0
      %p107 = por %p105, %p106
      %p108 = scmp.ne.s32.totalorder %s96, %s97
      %p109 = scmp.eq.s32.totalorder %s24, 1
      %p110 = por %p108, %p109
      %p112 = scmp.ne.s32.totalorder %s97, %s111
      %p113 = scmp.eq.s32.totalorder %s24, 0
      %p114 = por %p112, %p113
      %s116 = sadd.s32 %s115, 1
      %p119 = scmp.eq.s32.totalorder %s18, 1
      %p120 = scmp.ne.s32.totalorder %s115, %s117
      %p121 = scmp.eq.s32.totalorder %s18, 0
      %p122 = por %p120, %p121
      %p123 = scmp.ne.s32.totalorder %s115, %s117
      %p124 = scmp.eq.s32.totalorder %s23, 1
      %p125 = por %p123, %p124
      %p126 = scmp.ne.s32.totalorder %s117, %s118
      %p127 = scmp.eq.s32.totalorder %s23, 0
      %p128 = por %p126, %p127
      %p129 = scmp.ne.s32.totalorder %s117, %s118
      %p130 = scmp.eq.s32.totalorder %s24, 1
      %p131 = por %p129, %p130
      %p133 = scmp.ne.s32.totalorder %s118, %s132
      %p134 = scmp.eq.s32.totalorder %s24, 0
      %p135 = por %p133, %p134
      %s136 = ssub.s32 %s18, %s25
      %p137 = scmp.eq.s32.totalorder %s136, 0
      %s139 = sadd.s32 %s138, 1
      %s140 = scalar_select %p137, %s138, %s139
      %p143 = pneg %p137
      %p144 = scmp.eq.s32.totalorder %s18, 1
      %p145 = por %p143, %p144
      %p146 = scmp.ne.s32.totalorder %s138, %s141
      %p147 = scmp.eq.s32.totalorder %s18, 0
      %p148 = por %p146, %p147
      %p149 = scmp.ne.s32.totalorder %s138, %s141
      %p150 = scmp.eq.s32.totalorder %s23, 1
      %p151 = por %p149, %p150
      %p152 = scmp.ne.s32.totalorder %s141, %s142
      %p153 = scmp.eq.s32.totalorder %s23, 0
      %p154 = por %p152, %p153
      %p155 = scmp.ne.s32.totalorder %s141, %s142
      %p156 = scmp.eq.s32.totalorder %s24, 1
      %p157 = por %p155, %p156
      %p159 = scmp.ne.s32.totalorder %s142, %s158
      %p160 = scmp.eq.s32.totalorder %s24, 0
      %p161 = por %p159, %p160
      %p162 = scmp.le.s32.totalorder 1, %s18
      %p163 = scmp.lt.s32.totalorder %s18, 3
      %p164 = pnand %p162, %p163
      %p165 = pneg %p164
      // Predicated region
      $region9: #{tpu_custom_call.1} parent=5 // pred_check
        _
      $region10: #{tpu_custom_call.1} parent=5 // pred_check_branch
        %167 = sbr.rel (%p164) target = $region12
      $region11: #{tpu_custom_call.1} parent=5 // pred_region
        %s168 = ssub.s32 %s18, 1
        // Predicated region
        $region13: #{tpu_custom_call.1} parent=11 // pred_check
          %p169 = pneg %p65
        $region14: #{tpu_custom_call.1} parent=11 // pred_check_branch
          %171 = sbr.rel (%p169) target = $region16
        $region15: #{tpu_custom_call.1} parent=11 // pred_region
          %173 = vsyncadd [#allocation8], 0
          %s174 = sshll.u32 %s1, 4
          %s175 = int_to_ptr.hbm [resolvable:$true] %s174
          %s176 = sshll.u32 [#allocation7], 4
          %s177 = int_to_ptr.vmem [resolvable:$true] %s176
          %182 = dma.hbm_to_vmem [thread:$0]  %s175, 18432, %s177, [#allocation8], 128, 128, 8
        $region16: #{tpu_custom_call.1} parent=11 // pred_fallthru
          _
        // Predicated region
        $region17: #{tpu_custom_call.1} parent=11 // pred_check
          %p183 = pneg %p86
        $region18: #{tpu_custom_call.1} parent=11 // pred_check_branch
          %185 = sbr.rel (%p183) target = $region20
        $region19: #{tpu_custom_call.1} parent=11 // pred_region
          _
        $region20: #{tpu_custom_call.1} parent=11 // pred_fallthru
          _
        // Predicated region
        $region21: #{tpu_custom_call.1} parent=11 // pred_check
          %p186 = pneg %p107
        $region22: #{tpu_custom_call.1} parent=11 // pred_check_branch
          %188 = sbr.rel (%p186) target = $region24
        $region23: #{tpu_custom_call.1} parent=11 // pred_region
          %190 = vsyncadd [#allocation8], 0
          %s191 = sshll.u32 %s3, 4
          %s192 = int_to_ptr.hbm [resolvable:$true] %s191
          %s193 = sshll.u32 [#allocation9], 4
          %s194 = int_to_ptr.vmem [resolvable:$true] %s193
          %199 = dma.hbm_to_vmem [thread:$0]  %s192, 6144, %s194, [#allocation8], 128, 128, 8
        $region24: #{tpu_custom_call.1} parent=11 // pred_fallthru
          _
        // Predicated region
        $region25: #{tpu_custom_call.1} parent=11 // pred_check
          %p200 = pneg %p128
        $region26: #{tpu_custom_call.1} parent=11 // pred_check_branch
          %202 = sbr.rel (%p200) target = $region28
        $region27: #{tpu_custom_call.1} parent=11 // pred_region
          _
        $region28: #{tpu_custom_call.1} parent=11 // pred_fallthru
          _
      $region12: #{tpu_custom_call.1} parent=5 // pred_fallthru
        _
      %p203 = scmp.lt.s32.totalorder %s18, 2
      // Predicated region
      $region29: #{tpu_custom_call.1} parent=5 // pred_check
        %p204 = pneg %p203
      $region30: #{tpu_custom_call.1} parent=5 // pred_check_branch
        %206 = sbr.rel (%p204) target = $region32
      $region31: #{tpu_custom_call.1} parent=5 // pred_region
        // Predicated region
        $region33: #{tpu_custom_call.1} parent=31 // pred_check
          %p207 = pneg %p38
        $region34: #{tpu_custom_call.1} parent=31 // pred_check_branch
          %209 = sbr.rel (%p207) target = $region36
        $region35: #{tpu_custom_call.1} parent=31 // pred_region
          %s210 = sand.u32 %s28, 1
          %s211 = scalar_lea.sflag [#allocation5], %s210
          %s212 = sand.u32 %s28, 1
          %s213 = smul.addr %s212, 32
          %s214 = scalar_lea.vmem [#allocation4], %s213
          %216 = vsyncadd %s211, 0
          %s217 = smul.addr %s18, 4
          %s218 = smul.addr %s217, 8
          %s219 = scalar_lea.hbm %s0, %s218
          %s220 = sshll.u32 %s219, 4
          %s221 = int_to_ptr.hbm [resolvable:$true] %s220
          %s222 = sshll.u32 %s214, 4
          %s223 = int_to_ptr.vmem [resolvable:$true] %s222
          %228 = dma.hbm_to_vmem [thread:$0]  %s221, 512, %s223, %s211, 128, 128, 8
        $region36: #{tpu_custom_call.1} parent=31 // pred_fallthru
          _
      $region32: #{tpu_custom_call.1} parent=5 // pred_fallthru
        _
      %p229 = scmp.le.s32.totalorder 1, %s18
      %p230 = scmp.lt.s32.totalorder %s18, 3
      %p231 = pnand %p229, %p230
      %p232 = pneg %p231
      // Predicated region
      $region37: #{tpu_custom_call.1} parent=5 // pred_check
        _
      $region38: #{tpu_custom_call.1} parent=5 // pred_check_branch
        %234 = sbr.rel (%p231) target = $region40
      $region39: #{tpu_custom_call.1} parent=5 // pred_region
        %s235 = ssub.s32 %s18, 1
        %s236 = sand.u32 %s31, 1
        %s237 = scalar_lea.sflag [#allocation5], %s236
        %s238 = sand.u32 %s31, 1
        %s239 = smul.addr %s238, 32
        %s240 = scalar_lea.vmem [#allocation4], %s239
        // Predicated region
        $region41: #{tpu_custom_call.1} parent=39 // pred_check
          %p241 = pneg %p44
        $region42: #{tpu_custom_call.1} parent=39 // pred_check_branch
          %243 = sbr.rel (%p241) target = $region44
        $region43: #{tpu_custom_call.1} parent=39 // pred_region
          %245 = dma.done %s237, 512
        $region44: #{tpu_custom_call.1} parent=39 // pred_fallthru
          _
        // Predicated region
        $region45: #{tpu_custom_call.1} parent=39 // pred_check
          %p246 = pneg %p65
        $region46: #{tpu_custom_call.1} parent=39 // pred_check_branch
          %248 = sbr.rel (%p246) target = $region48
        $region47: #{tpu_custom_call.1} parent=39 // pred_region
          %250 = dma.done [#allocation8], 18432
        $region48: #{tpu_custom_call.1} parent=39 // pred_fallthru
          _
        // Predicated region
        $region49: #{tpu_custom_call.1} parent=39 // pred_check
          %p251 = pneg %p107
        $region50: #{tpu_custom_call.1} parent=39 // pred_check_branch
          %253 = sbr.rel (%p251) target = $region52
        $region51: #{tpu_custom_call.1} parent=39 // pred_region
          %255 = dma.done [#allocation8], 6144
        $region52: #{tpu_custom_call.1} parent=39 // pred_fallthru
          _
        %s256 = sand.u32 %s31, 1
        %s257 = scalar_lea.sflag [#allocation5], %s256
        %s258 = sand.u32 %s31, 1
        %s259 = smul.addr %s258, 32
        %s260 = scalar_lea.vmem [#allocation4], %s259
        %p261 = pneg %p44
        %p262 = pneg %p41
        %p263 = pneg %p65
        %p264 = pneg %p62
        %p265 = pneg %p86
        %p266 = pneg %p83
        %p267 = pneg %p107
        %p268 = pneg %p104
        %p269 = pneg %p128
        %p270 = pneg %p125
        %p271 = pneg %p154
        %p272 = pneg %p151
        %s273 = sand.u32 %s141, 1
        %s274 = scalar_lea.sflag [#allocation6], %s273
        %s275 = sand.u32 %s141, 1
        %s276 = smul.addr %s275, 32
        %s277 = scalar_lea.vmem [#allocation10], %s276
        %p278 = scmp.eq.s32.totalorder %s23, 0
        // Predicated region
        $region53: #{tpu_custom_call.1} parent=39 // pred_check
          %p279 = pneg %p278
        $region54: #{tpu_custom_call.1} parent=39 // pred_check_branch
          %281 = sbr.rel (%p279) target = $region56
        $region55: #{tpu_custom_call.1} parent=39 // pred_region
          %282 = vst [vmem:[#allocation2] sm:$0xff] 0.0
          %283 = vst [vmem:[#allocation2 + $0x8] sm:$0x3] 0.0
          %284 = vst [vmem:[#allocation2 + $0x10] sm:$0xff] 0.0
          %285 = vst [vmem:[#allocation2 + $0x18] sm:$0x3] 0.0
          %286 = vst [vmem:[#allocation2 + $0x20] sm:$0xff] 0.0
          %287 = vst [vmem:[#allocation2 + $0x28] sm:$0x3] 0.0
          %288 = vst [vmem:[#allocation2 + $0x30] sm:$0xff] 0.0
          %289 = vst [vmem:[#allocation2 + $0x38] sm:$0x3] 0.0
          %290 = vst [vmem:[#allocation2 + $0x40] sm:$0xff] 0.0
          %291 = vst [vmem:[#allocation2 + $0x48] sm:$0x3] 0.0
          %292 = vst [vmem:[#allocation2 + $0x50] sm:$0xff] 0.0
          %293 = vst [vmem:[#allocation2 + $0x58] sm:$0x3] 0.0
          %294 = vst [vmem:[#allocation3] sm:$0xff] 0.0
          %295 = vst [vmem:[#allocation3 + $0x8] sm:$0x3] 0.0
          %296 = vst [vmem:[#allocation3 + $0x10] sm:$0xff] 0.0
          %297 = vst [vmem:[#allocation3 + $0x18] sm:$0x3] 0.0
          %298 = vst [vmem:[#allocation3 + $0x20] sm:$0xff] 0.0
          %299 = vst [vmem:[#allocation3 + $0x28] sm:$0x3] 0.0
          %300 = vst [vmem:[#allocation3 + $0x30] sm:$0xff] 0.0
          %301 = vst [vmem:[#allocation3 + $0x38] sm:$0x3] 0.0
        $region56: #{tpu_custom_call.1} parent=39 // pred_fallthru
          _
        %v302 = vld [vmem:[%s240] sm:$0xff]
        %v303 = vld [vmem:[%s240 + $0x8] sm:$0xff]
        %v304 = vld [vmem:[%s240 + $0x10] sm:$0xff]
        %v305 = vld [vmem:[%s240 + $0x18] sm:$0xff]
        %s306 = scalar_lea.vmem [#allocation2], 16
        %307 = vst [vmem:[%s306 + $0x1] sm:$0xff] %v302
        %308 = vst [vmem:[%s306 + $0x11] sm:$0xff] %v303
        %309 = vst [vmem:[%s306 + $0x21] sm:$0xff] %v304
        %310 = vst [vmem:[%s306 + $0x31] sm:$0xff] %v305
        %v311 = vld [vmem:[#allocation2] sm:$0xff]
        %v312 = vld [vmem:[#allocation2 + $0x10] sm:$0xff]
        %v313 = vld [vmem:[#allocation2 + $0x20] sm:$0xff]
        %v314 = vld [vmem:[#allocation2 + $0x30] sm:$0xff]
        %v315 = vld [vmem:[#allocation7] sm:$0xff]
        %v316 = vld [vmem:[#allocation7 + $0x8] sm:$0xff]
        %v317 = vld [vmem:[#allocation7 + $0x10] sm:$0xff]
        %v318 = vld [vmem:[#allocation7 + $0x18] sm:$0xff]
        %v319 = vld [vmem:[#allocation7 + $0x20] sm:$0xff]
        %v320 = vld [vmem:[#allocation7 + $0x28] sm:$0xff]
        %v321 = vld [vmem:[#allocation7 + $0x30] sm:$0xff]
        %v322 = vld [vmem:[#allocation7 + $0x38] sm:$0xff]
        %v323 = vld [vmem:[#allocation7 + $0x40] sm:$0xff]
        %v324 = vld [vmem:[#allocation7 + $0x48] sm:$0xff]
        %v325 = vld [vmem:[#allocation7 + $0x50] sm:$0xff]
        %v326 = vld [vmem:[#allocation7 + $0x58] sm:$0xff]
        %v327 = vld [vmem:[#allocation7 + $0x60] sm:$0xff]
        %v328 = vld [vmem:[#allocation7 + $0x68] sm:$0xff]
        %v329 = vld [vmem:[#allocation7 + $0x70] sm:$0xff]
        %v330 = vld [vmem:[#allocation7 + $0x78] sm:$0xff]
        %v331 = vld [vmem:[#allocation2 + $0x1] sm:$0xff]
        %v332 = vld [vmem:[#allocation2 + $0x11] sm:$0xff]
        %v333 = vld [vmem:[#allocation2 + $0x21] sm:$0xff]
        %v334 = vld [vmem:[#allocation2 + $0x31] sm:$0xff]
        %s335 = scalar_lea.vmem [#allocation7], 128
        %v336 = vld [vmem:[%s335] sm:$0xff]
        %v337 = vld [vmem:[%s335 + $0x8] sm:$0xff]
        %v338 = vld [vmem:[%s335 + $0x10] sm:$0xff]
        %v339 = vld [vmem:[%s335 + $0x18] sm:$0xff]
        %v340 = vld [vmem:[%s335 + $0x20] sm:$0xff]
        %v341 = vld [vmem:[%s335 + $0x28] sm:$0xff]
        %v342 = vld [vmem:[%s335 + $0x30] sm:$0xff]
        %v343 = vld [vmem:[%s335 + $0x38] sm:$0xff]
        %v344 = vld [vmem:[%s335 + $0x40] sm:$0xff]
        %v345 = vld [vmem:[%s335 + $0x48] sm:$0xff]
        %v346 = vld [vmem:[%s335 + $0x50] sm:$0xff]
        %v347 = vld [vmem:[%s335 + $0x58] sm:$0xff]
        %v348 = vld [vmem:[%s335 + $0x60] sm:$0xff]
        %v349 = vld [vmem:[%s335 + $0x68] sm:$0xff]
        %v350 = vld [vmem:[%s335 + $0x70] sm:$0xff]
        %v351 = vld [vmem:[%s335 + $0x78] sm:$0xff]
        %352 = vmatpush.msra.mxu0 %v351
        %353 = vmatpush.msra.mxu0 %v350
        %354 = vmatpush.msra.mxu0 %v349
        %355 = vmatpush.msra.mxu0 %v348
        %356 = vmatpush.msra.mxu0 %v347
        %357 = vmatpush.msra.mxu0 %v346
        %358 = vmatpush.msra.mxu0 %v345
        %359 = vmatpush.msra.mxu0 %v344
        %360 = vmatpush.msra.mxu0 %v343
        %361 = vmatpush.msra.mxu0 %v342
        %362 = vmatpush.msra.mxu0 %v341
        %363 = vmatpush.msra.mxu0 %v340
        %364 = vmatpush.msra.mxu0 %v339
        %365 = vmatpush.msra.mxu0 %v338
        %366 = vmatpush.msra.mxu0 %v337
        %367 = vmatpush.msra.mxu0 %v336
        %368 = vmatmul.f32.gmra.mxu0 %v331
        %v369 = vpop.f32.mrf.mxu0
        %v370 = vadd.f32 0.0, %v369
        %371 = vmatmul.f32.gmra.mxu0 %v332
        %v372 = vpop.f32.mrf.mxu0
        %v373 = vadd.f32 0.0, %v372
        %374 = vmatmul.f32.gmra.mxu0 %v333
        %v375 = vpop.f32.mrf.mxu0
        %v376 = vadd.f32 0.0, %v375
        %377 = vmatmul.f32.gmra.mxu0 %v334
        %v378 = vpop.f32.mrf.mxu0
        %v379 = vadd.f32 0.0, %v378
        %380 = vdwg.mxu0
        %381 = vmatpush.msra.mxu0 %v330
        %382 = vmatpush.msra.mxu0 %v329
        %383 = vmatpush.msra.mxu0 %v328
        %384 = vmatpush.msra.mxu0 %v327
        %385 = vmatpush.msra.mxu0 %v326
        %386 = vmatpush.msra.mxu0 %v325
        %387 = vmatpush.msra.mxu0 %v324
        %388 = vmatpush.msra.mxu0 %v323
        %389 = vmatpush.msra.mxu0 %v322
        %390 = vmatpush.msra.mxu0 %v321
        %391 = vmatpush.msra.mxu0 %v320
        %392 = vmatpush.msra.mxu0 %v319
        %393 = vmatpush.msra.mxu0 %v318
        %394 = vmatpush.msra.mxu0 %v317
        %395 = vmatpush.msra.mxu0 %v316
        %396 = vmatpush.msra.mxu0 %v315
        %397 = vmatmul.f32.gmra.mxu0 %v311
        %v398 = vpop.f32.mrf.mxu0
        %v399 = vadd.f32 %v370, %v398
        %400 = vmatmul.f32.gmra.mxu0 %v312
        %v401 = vpop.f32.mrf.mxu0
        %v402 = vadd.f32 %v373, %v401
        %403 = vmatmul.f32.gmra.mxu0 %v313
        %v404 = vpop.f32.mrf.mxu0
        %v405 = vadd.f32 %v376, %v404
        %406 = vmatmul.f32.gmra.mxu0 %v314
        %v407 = vpop.f32.mrf.mxu0
        %v408 = vadd.f32 %v379, %v407
        %409 = vdwg.mxu0
        %v410 = vld [vmem:[#allocation2 + $0x2] sm:$0xff]
        %v411 = vld [vmem:[#allocation2 + $0x12] sm:$0xff]
        %v412 = vld [vmem:[#allocation2 + $0x22] sm:$0xff]
        %v413 = vld [vmem:[#allocation2 + $0x32] sm:$0xff]
        %s414 = scalar_lea.vmem [#allocation7], 256
        %v415 = vld [vmem:[%s414] sm:$0xff]
        %v416 = vld [vmem:[%s414 + $0x8] sm:$0xff]
        %v417 = vld [vmem:[%s414 + $0x10] sm:$0xff]
        %v418 = vld [vmem:[%s414 + $0x18] sm:$0xff]
        %v419 = vld [vmem:[%s414 + $0x20] sm:$0xff]
        %v420 = vld [vmem:[%s414 + $0x28] sm:$0xff]
        %v421 = vld [vmem:[%s414 + $0x30] sm:$0xff]
        %v422 = vld [vmem:[%s414 + $0x38] sm:$0xff]
        %v423 = vld [vmem:[%s414 + $0x40] sm:$0xff]
        %v424 = vld [vmem:[%s414 + $0x48] sm:$0xff]
        %v425 = vld [vmem:[%s414 + $0x50] sm:$0xff]
        %v426 = vld [vmem:[%s414 + $0x58] sm:$0xff]
        %v427 = vld [vmem:[%s414 + $0x60] sm:$0xff]
        %v428 = vld [vmem:[%s414 + $0x68] sm:$0xff]
        %v429 = vld [vmem:[%s414 + $0x70] sm:$0xff]
        %v430 = vld [vmem:[%s414 + $0x78] sm:$0xff]
        %431 = vmatpush.msra.mxu0 %v430
        %432 = vmatpush.msra.mxu0 %v429
        %433 = vmatpush.msra.mxu0 %v428
        %434 = vmatpush.msra.mxu0 %v427
        %435 = vmatpush.msra.mxu0 %v426
        %436 = vmatpush.msra.mxu0 %v425
        %437 = vmatpush.msra.mxu0 %v424
        %438 = vmatpush.msra.mxu0 %v423
        %439 = vmatpush.msra.mxu0 %v422
        %440 = vmatpush.msra.mxu0 %v421
        %441 = vmatpush.msra.mxu0 %v420
        %442 = vmatpush.msra.mxu0 %v419
        %443 = vmatpush.msra.mxu0 %v418
        %444 = vmatpush.msra.mxu0 %v417
        %445 = vmatpush.msra.mxu0 %v416
        %446 = vmatpush.msra.mxu0 %v415
        %447 = vmatmul.f32.gmra.mxu0 %v410
        %v448 = vpop.f32.mrf.mxu0
        %v449 = vadd.f32 0.0, %v448
        %450 = vmatmul.f32.gmra.mxu0 %v411
        %v451 = vpop.f32.mrf.mxu0
        %v452 = vadd.f32 0.0, %v451
        %453 = vmatmul.f32.gmra.mxu0 %v412
        %v454 = vpop.f32.mrf.mxu0
        %v455 = vadd.f32 0.0, %v454
        %456 = vmatmul.f32.gmra.mxu0 %v413
        %v457 = vpop.f32.mrf.mxu0
        %v458 = vadd.f32 0.0, %v457
        %459 = vdwg.mxu0
        %v460 = vadd.f32 %v399, %v449
        %v461 = vadd.f32 %v402, %v452
        %v462 = vadd.f32 %v405, %v455
        %v463 = vadd.f32 %v408, %v458
        %v464 = vld [vmem:[%s306] sm:$0xff]
        %v465 = vld [vmem:[%s306 + $0x10] sm:$0xff]
        %v466 = vld [vmem:[%s306 + $0x20] sm:$0xff]
        %v467 = vld [vmem:[%s306 + $0x30] sm:$0xff]
        %s468 = scalar_lea.vmem [#allocation7], 384
        %v469 = vld [vmem:[%s468] sm:$0xff]
        %v470 = vld [vmem:[%s468 + $0x8] sm:$0xff]
        %v471 = vld [vmem:[%s468 + $0x10] sm:$0xff]
        %v472 = vld [vmem:[%s468 + $0x18] sm:$0xff]
        %v473 = vld [vmem:[%s468 + $0x20] sm:$0xff]
        %v474 = vld [vmem:[%s468 + $0x28] sm:$0xff]
        %v475 = vld [vmem:[%s468 + $0x30] sm:$0xff]
        %v476 = vld [vmem:[%s468 + $0x38] sm:$0xff]
        %v477 = vld [vmem:[%s468 + $0x40] sm:$0xff]
        %v478 = vld [vmem:[%s468 + $0x48] sm:$0xff]
        %v479 = vld [vmem:[%s468 + $0x50] sm:$0xff]
        %v480 = vld [vmem:[%s468 + $0x58] sm:$0xff]
        %v481 = vld [vmem:[%s468 + $0x60] sm:$0xff]
        %v482 = vld [vmem:[%s468 + $0x68] sm:$0xff]
        %v483 = vld [vmem:[%s468 + $0x70] sm:$0xff]
        %v484 = vld [vmem:[%s468 + $0x78] sm:$0xff]
        %485 = vmatpush.msra.mxu0 %v484
        %486 = vmatpush.msra.mxu0 %v483
        %487 = vmatpush.msra.mxu0 %v482
        %488 = vmatpush.msra.mxu0 %v481
        %489 = vmatpush.msra.mxu0 %v480
        %490 = vmatpush.msra.mxu0 %v479
        %491 = vmatpush.msra.mxu0 %v478
        %492 = vmatpush.msra.mxu0 %v477
        %493 = vmatpush.msra.mxu0 %v476
        %494 = vmatpush.msra.mxu0 %v475
        %495 = vmatpush.msra.mxu0 %v474
        %496 = vmatpush.msra.mxu0 %v473
        %497 = vmatpush.msra.mxu0 %v472
        %498 = vmatpush.msra.mxu0 %v471
        %499 = vmatpush.msra.mxu0 %v470
        %500 = vmatpush.msra.mxu0 %v469
        %501 = vmatmul.f32.gmra.mxu0 %v464
        %v502 = vpop.f32.mrf.mxu0
        %v503 = vadd.f32 0.0, %v502
        %504 = vmatmul.f32.gmra.mxu0 %v465
        %v505 = vpop.f32.mrf.mxu0
        %v506 = vadd.f32 0.0, %v505
        %507 = vmatmul.f32.gmra.mxu0 %v466
        %v508 = vpop.f32.mrf.mxu0
        %v509 = vadd.f32 0.0, %v508
        %510 = vmatmul.f32.gmra.mxu0 %v467
        %v511 = vpop.f32.mrf.mxu0
        %v512 = vadd.f32 0.0, %v511
        %513 = vdwg.mxu0
        %v514 = vadd.f32 %v460, %v503
        %v515 = vadd.f32 %v461, %v506
        %v516 = vadd.f32 %v462, %v509
        %v517 = vadd.f32 %v463, %v512
        %v518 = vld [vmem:[%s306 + $0x1] sm:$0xff]
        %v519 = vld [vmem:[%s306 + $0x11] sm:$0xff]
        %v520 = vld [vmem:[%s306 + $0x21] sm:$0xff]
        %v521 = vld [vmem:[%s306 + $0x31] sm:$0xff]
        %s522 = scalar_lea.vmem [#allocation7], 512
        %v523 = vld [vmem:[%s522] sm:$0xff]
        %v524 = vld [vmem:[%s522 + $0x8] sm:$0xff]
        %v525 = vld [vmem:[%s522 + $0x10] sm:$0xff]
        %v526 = vld [vmem:[%s522 + $0x18] sm:$0xff]
        %v527 = vld [vmem:[%s522 + $0x20] sm:$0xff]
        %v528 = vld [vmem:[%s522 + $0x28] sm:$0xff]
        %v529 = vld [vmem:[%s522 + $0x30] sm:$0xff]
        %v530 = vld [vmem:[%s522 + $0x38] sm:$0xff]
        %v531 = vld [vmem:[%s522 + $0x40] sm:$0xff]
        %v532 = vld [vmem:[%s522 + $0x48] sm:$0xff]
        %v533 = vld [vmem:[%s522 + $0x50] sm:$0xff]
        %v534 = vld [vmem:[%s522 + $0x58] sm:$0xff]
        %v535 = vld [vmem:[%s522 + $0x60] sm:$0xff]
        %v536 = vld [vmem:[%s522 + $0x68] sm:$0xff]
        %v537 = vld [vmem:[%s522 + $0x70] sm:$0xff]
        %v538 = vld [vmem:[%s522 + $0x78] sm:$0xff]
        %539 = vmatpush.msra.mxu0 %v538
        %540 = vmatpush.msra.mxu0 %v537
        %541 = vmatpush.msra.mxu0 %v536
        %542 = vmatpush.msra.mxu0 %v535
        %543 = vmatpush.msra.mxu0 %v534
        %544 = vmatpush.msra.mxu0 %v533
        %545 = vmatpush.msra.mxu0 %v532
        %546 = vmatpush.msra.mxu0 %v531
        %547 = vmatpush.msra.mxu0 %v530
        %548 = vmatpush.msra.mxu0 %v529
        %549 = vmatpush.msra.mxu0 %v528
        %550 = vmatpush.msra.mxu0 %v527
        %551 = vmatpush.msra.mxu0 %v526
        %552 = vmatpush.msra.mxu0 %v525
        %553 = vmatpush.msra.mxu0 %v524
        %554 = vmatpush.msra.mxu0 %v523
        %555 = vmatmul.f32.gmra.mxu0 %v518
        %v556 = vpop.f32.mrf.mxu0
        %v557 = vadd.f32 0.0, %v556
        %558 = vmatmul.f32.gmra.mxu0 %v519
        %v559 = vpop.f32.mrf.mxu0
        %v560 = vadd.f32 0.0, %v559
        %561 = vmatmul.f32.gmra.mxu0 %v520
        %v562 = vpop.f32.mrf.mxu0
        %v563 = vadd.f32 0.0, %v562
        %564 = vmatmul.f32.gmra.mxu0 %v521
        %v565 = vpop.f32.mrf.mxu0
        %v566 = vadd.f32 0.0, %v565
        %567 = vdwg.mxu0
        %v568 = vadd.f32 %v514, %v557
        %v569 = vadd.f32 %v515, %v560
        %v570 = vadd.f32 %v516, %v563
        %v571 = vadd.f32 %v517, %v566
        %v572 = vld [vmem:[%s306 + $0x2] sm:$0xff]
        %v573 = vld [vmem:[%s306 + $0x12] sm:$0xff]
        %v574 = vld [vmem:[%s306 + $0x22] sm:$0xff]
        %v575 = vld [vmem:[%s306 + $0x32] sm:$0xff]
        %s576 = scalar_lea.vmem [#allocation7], 640
        %v577 = vld [vmem:[%s576] sm:$0xff]
        %v578 = vld [vmem:[%s576 + $0x8] sm:$0xff]
        %v579 = vld [vmem:[%s576 + $0x10] sm:$0xff]
        %v580 = vld [vmem:[%s576 + $0x18] sm:$0xff]
        %v581 = vld [vmem:[%s576 + $0x20] sm:$0xff]
        %v582 = vld [vmem:[%s576 + $0x28] sm:$0xff]
        %v583 = vld [vmem:[%s576 + $0x30] sm:$0xff]
        %v584 = vld [vmem:[%s576 + $0x38] sm:$0xff]
        %v585 = vld [vmem:[%s576 + $0x40] sm:$0xff]
        %v586 = vld [vmem:[%s576 + $0x48] sm:$0xff]
        %v587 = vld [vmem:[%s576 + $0x50] sm:$0xff]
        %v588 = vld [vmem:[%s576 + $0x58] sm:$0xff]
        %v589 = vld [vmem:[%s576 + $0x60] sm:$0xff]
        %v590 = vld [vmem:[%s576 + $0x68] sm:$0xff]
        %v591 = vld [vmem:[%s576 + $0x70] sm:$0xff]
        %v592 = vld [vmem:[%s576 + $0x78] sm:$0xff]
        %593 = vmatpush.msra.mxu0 %v592
        %594 = vmatpush.msra.mxu0 %v591
        %595 = vmatpush.msra.mxu0 %v590
        %596 = vmatpush.msra.mxu0 %v589
        %597 = vmatpush.msra.mxu0 %v588
        %598 = vmatpush.msra.mxu0 %v587
        %599 = vmatpush.msra.mxu0 %v586
        %600 = vmatpush.msra.mxu0 %v585
        %601 = vmatpush.msra.mxu0 %v584
        %602 = vmatpush.msra.mxu0 %v583
        %603 = vmatpush.msra.mxu0 %v582
        %604 = vmatpush.msra.mxu0 %v581
        %605 = vmatpush.msra.mxu0 %v580
        %606 = vmatpush.msra.mxu0 %v579
        %607 = vmatpush.msra.mxu0 %v578
        %608 = vmatpush.msra.mxu0 %v577
        %609 = vmatmul.f32.gmra.mxu0 %v572
        %v610 = vpop.f32.mrf.mxu0
        %v611 = vadd.f32 0.0, %v610
        %612 = vmatmul.f32.gmra.mxu0 %v573
        %v613 = vpop.f32.mrf.mxu0
        %v614 = vadd.f32 0.0, %v613
        %615 = vmatmul.f32.gmra.mxu0 %v574
        %v616 = vpop.f32.mrf.mxu0
        %v617 = vadd.f32 0.0, %v616
        %618 = vmatmul.f32.gmra.mxu0 %v575
        %v619 = vpop.f32.mrf.mxu0
        %v620 = vadd.f32 0.0, %v619
        %621 = vdwg.mxu0
        %v622 = vadd.f32 %v568, %v611
        %v623 = vadd.f32 %v569, %v614
        %v624 = vadd.f32 %v570, %v617
        %v625 = vadd.f32 %v571, %v620
        %s626 = scalar_lea.vmem [#allocation2], 32
        %v627 = vld [vmem:[%s626] sm:$0xff]
        %v628 = vld [vmem:[%s626 + $0x10] sm:$0xff]
        %v629 = vld [vmem:[%s626 + $0x20] sm:$0xff]
        %v630 = vld [vmem:[%s626 + $0x30] sm:$0xff]
        %s631 = scalar_lea.vmem [#allocation7], 768
        %v632 = vld [vmem:[%s631] sm:$0xff]
        %v633 = vld [vmem:[%s631 + $0x8] sm:$0xff]
        %v634 = vld [vmem:[%s631 + $0x10] sm:$0xff]
        %v635 = vld [vmem:[%s631 + $0x18] sm:$0xff]
        %v636 = vld [vmem:[%s631 + $0x20] sm:$0xff]
        %v637 = vld [vmem:[%s631 + $0x28] sm:$0xff]
        %v638 = vld [vmem:[%s631 + $0x30] sm:$0xff]
        %v639 = vld [vmem:[%s631 + $0x38] sm:$0xff]
        %v640 = vld [vmem:[%s631 + $0x40] sm:$0xff]
        %v641 = vld [vmem:[%s631 + $0x48] sm:$0xff]
        %v642 = vld [vmem:[%s631 + $0x50] sm:$0xff]
        %v643 = vld [vmem:[%s631 + $0x58] sm:$0xff]
        %v644 = vld [vmem:[%s631 + $0x60] sm:$0xff]
        %v645 = vld [vmem:[%s631 + $0x68] sm:$0xff]
        %v646 = vld [vmem:[%s631 + $0x70] sm:$0xff]
        %v647 = vld [vmem:[%s631 + $0x78] sm:$0xff]
        %648 = vmatpush.msra.mxu0 %v647
        %649 = vmatpush.msra.mxu0 %v646
        %650 = vmatpush.msra.mxu0 %v645
        %651 = vmatpush.msra.mxu0 %v644
        %652 = vmatpush.msra.mxu0 %v643
        %653 = vmatpush.msra.mxu0 %v642
        %654 = vmatpush.msra.mxu0 %v641
        %655 = vmatpush.msra.mxu0 %v640
        %656 = vmatpush.msra.mxu0 %v639
        %657 = vmatpush.msra.mxu0 %v638
        %658 = vmatpush.msra.mxu0 %v637
        %659 = vmatpush.msra.mxu0 %v636
        %660 = vmatpush.msra.mxu0 %v635
        %661 = vmatpush.msra.mxu0 %v634
        %662 = vmatpush.msra.mxu0 %v633
        %663 = vmatpush.msra.mxu0 %v632
        %664 = vmatmul.f32.gmra.mxu0 %v627
        %v665 = vpop.f32.mrf.mxu0
        %v666 = vadd.f32 0.0, %v665
        %667 = vmatmul.f32.gmra.mxu0 %v628
        %v668 = vpop.f32.mrf.mxu0
        %v669 = vadd.f32 0.0, %v668
        %670 = vmatmul.f32.gmra.mxu0 %v629
        %v671 = vpop.f32.mrf.mxu0
        %v672 = vadd.f32 0.0, %v671
        %673 = vmatmul.f32.gmra.mxu0 %v630
        %v674 = vpop.f32.mrf.mxu0
        %v675 = vadd.f32 0.0, %v674
        %676 = vdwg.mxu0
        %v677 = vadd.f32 %v622, %v666
        %v678 = vadd.f32 %v623, %v669
        %v679 = vadd.f32 %v624, %v672
        %v680 = vadd.f32 %v625, %v675
        %v681 = vld [vmem:[%s626 + $0x1] sm:$0xff]
        %v682 = vld [vmem:[%s626 + $0x11] sm:$0xff]
        %v683 = vld [vmem:[%s626 + $0x21] sm:$0xff]
        %v684 = vld [vmem:[%s626 + $0x31] sm:$0xff]
        %s685 = scalar_lea.vmem [#allocation7], 896
        %v686 = vld [vmem:[%s685] sm:$0xff]
        %v687 = vld [vmem:[%s685 + $0x8] sm:$0xff]
        %v688 = vld [vmem:[%s685 + $0x10] sm:$0xff]
        %v689 = vld [vmem:[%s685 + $0x18] sm:$0xff]
        %v690 = vld [vmem:[%s685 + $0x20] sm:$0xff]
        %v691 = vld [vmem:[%s685 + $0x28] sm:$0xff]
        %v692 = vld [vmem:[%s685 + $0x30] sm:$0xff]
        %v693 = vld [vmem:[%s685 + $0x38] sm:$0xff]
        %v694 = vld [vmem:[%s685 + $0x40] sm:$0xff]
        %v695 = vld [vmem:[%s685 + $0x48] sm:$0xff]
        %v696 = vld [vmem:[%s685 + $0x50] sm:$0xff]
        %v697 = vld [vmem:[%s685 + $0x58] sm:$0xff]
        %v698 = vld [vmem:[%s685 + $0x60] sm:$0xff]
        %v699 = vld [vmem:[%s685 + $0x68] sm:$0xff]
        %v700 = vld [vmem:[%s685 + $0x70] sm:$0xff]
        %v701 = vld [vmem:[%s685 + $0x78] sm:$0xff]
        %702 = vmatpush.msra.mxu0 %v701
        %703 = vmatpush.msra.mxu0 %v700
        %704 = vmatpush.msra.mxu0 %v699
        %705 = vmatpush.msra.mxu0 %v698
        %706 = vmatpush.msra.mxu0 %v697
        %707 = vmatpush.msra.mxu0 %v696
        %708 = vmatpush.msra.mxu0 %v695
        %709 = vmatpush.msra.mxu0 %v694
        %710 = vmatpush.msra.mxu0 %v693
        %711 = vmatpush.msra.mxu0 %v692
        %712 = vmatpush.msra.mxu0 %v691
        %713 = vmatpush.msra.mxu0 %v690
        %714 = vmatpush.msra.mxu0 %v689
        %715 = vmatpush.msra.mxu0 %v688
        %716 = vmatpush.msra.mxu0 %v687
        %717 = vmatpush.msra.mxu0 %v686
        %718 = vmatmul.f32.gmra.mxu0 %v681
        %v719 = vpop.f32.mrf.mxu0
        %v720 = vadd.f32 0.0, %v719
        %721 = vmatmul.f32.gmra.mxu0 %v682
        %v722 = vpop.f32.mrf.mxu0
        %v723 = vadd.f32 0.0, %v722
        %724 = vmatmul.f32.gmra.mxu0 %v683
        %v725 = vpop.f32.mrf.mxu0
        %v726 = vadd.f32 0.0, %v725
        %727 = vmatmul.f32.gmra.mxu0 %v684
        %v728 = vpop.f32.mrf.mxu0
        %v729 = vadd.f32 0.0, %v728
        %730 = vdwg.mxu0
        %v731 = vadd.f32 %v677, %v720
        %v732 = vadd.f32 %v678, %v723
        %v733 = vadd.f32 %v679, %v726
        %v734 = vadd.f32 %v680, %v729
        %v735 = vld [vmem:[%s626 + $0x2] sm:$0xff]
        %v736 = vld [vmem:[%s626 + $0x12] sm:$0xff]
        %v737 = vld [vmem:[%s626 + $0x22] sm:$0xff]
        %v738 = vld [vmem:[%s626 + $0x32] sm:$0xff]
        %s739 = scalar_lea.vmem [#allocation7], 1024
        %v740 = vld [vmem:[%s739] sm:$0xff]
        %v741 = vld [vmem:[%s739 + $0x8] sm:$0xff]
        %v742 = vld [vmem:[%s739 + $0x10] sm:$0xff]
        %v743 = vld [vmem:[%s739 + $0x18] sm:$0xff]
        %v744 = vld [vmem:[%s739 + $0x20] sm:$0xff]
        %v745 = vld [vmem:[%s739 + $0x28] sm:$0xff]
        %v746 = vld [vmem:[%s739 + $0x30] sm:$0xff]
        %v747 = vld [vmem:[%s739 + $0x38] sm:$0xff]
        %v748 = vld [vmem:[%s739 + $0x40] sm:$0xff]
        %v749 = vld [vmem:[%s739 + $0x48] sm:$0xff]
        %v750 = vld [vmem:[%s739 + $0x50] sm:$0xff]
        %v751 = vld [vmem:[%s739 + $0x58] sm:$0xff]
        %v752 = vld [vmem:[%s739 + $0x60] sm:$0xff]
        %v753 = vld [vmem:[%s739 + $0x68] sm:$0xff]
        %v754 = vld [vmem:[%s739 + $0x70] sm:$0xff]
        %v755 = vld [vmem:[%s739 + $0x78] sm:$0xff]
        %756 = vmatpush.msra.mxu0 %v755
        %757 = vmatpush.msra.mxu0 %v754
        %758 = vmatpush.msra.mxu0 %v753
        %759 = vmatpush.msra.mxu0 %v752
        %760 = vmatpush.msra.mxu0 %v751
        %761 = vmatpush.msra.mxu0 %v750
        %762 = vmatpush.msra.mxu0 %v749
        %763 = vmatpush.msra.mxu0 %v748
        %764 = vmatpush.msra.mxu0 %v747
        %765 = vmatpush.msra.mxu0 %v746
        %766 = vmatpush.msra.mxu0 %v745
        %767 = vmatpush.msra.mxu0 %v744
        %768 = vmatpush.msra.mxu0 %v743
        %769 = vmatpush.msra.mxu0 %v742
        %770 = vmatpush.msra.mxu0 %v741
        %771 = vmatpush.msra.mxu0 %v740
        %772 = vmatmul.f32.gmra.mxu0 %v735
        %v773 = vpop.f32.mrf.mxu0
        %v774 = vadd.f32 0.0, %v773
        %775 = vmatmul.f32.gmra.mxu0 %v736
        %v776 = vpop.f32.mrf.mxu0
        %v777 = vadd.f32 0.0, %v776
        %778 = vmatmul.f32.gmra.mxu0 %v737
        %v779 = vpop.f32.mrf.mxu0
        %v780 = vadd.f32 0.0, %v779
        %781 = vmatmul.f32.gmra.mxu0 %v738
        %v782 = vpop.f32.mrf.mxu0
        %v783 = vadd.f32 0.0, %v782
        %784 = vdwg.mxu0
        %v785 = vadd.f32 %v731, %v774
        %v786 = vadd.f32 %v732, %v777
        %v787 = vadd.f32 %v733, %v780
        %v788 = vadd.f32 %v734, %v783
        %v789 = vld [vmem:[%s2] sm:$0x1]
        %v791 = vperm.slane %v789, 0
        %v793 = vadd.f32 %v785, %v791
        %v794 = vadd.f32 %v786, %v791
        %v795 = vadd.f32 %v787, %v791
        %v796 = vadd.f32 %v788, %v791
        %v797 = vmax.f32 %v793, 0.0
        %v798 = vmax.f32 %v794, 0.0
        %v799 = vmax.f32 %v795, 0.0
        %v800 = vmax.f32 %v796, 0.0
        %801 = vst [vmem:[#allocation3 + $0x1] sm:$0xff] %v797
        %802 = vst [vmem:[#allocation3 + $0x11] sm:$0xff] %v798
        %803 = vst [vmem:[#allocation3 + $0x21] sm:$0xff] %v799
        %804 = vst [vmem:[#allocation3 + $0x31] sm:$0xff] %v800
        %v805 = vld [vmem:[#allocation3] sm:$0xff]
        %v806 = vld [vmem:[#allocation3 + $0x10] sm:$0xff]
        %v807 = vld [vmem:[#allocation3 + $0x20] sm:$0xff]
        %v808 = vld [vmem:[#allocation3 + $0x30] sm:$0xff]
        %v809 = vld [vmem:[#allocation9] sm:$0xff]
        %v810 = vld [vmem:[#allocation9 + $0x8] sm:$0xff]
        %v811 = vld [vmem:[#allocation9 + $0x10] sm:$0xff]
        %v812 = vld [vmem:[#allocation9 + $0x18] sm:$0xff]
        %v813 = vld [vmem:[#allocation9 + $0x20] sm:$0xff]
        %v814 = vld [vmem:[#allocation9 + $0x28] sm:$0xff]
        %v815 = vld [vmem:[#allocation9 + $0x30] sm:$0xff]
        %v816 = vld [vmem:[#allocation9 + $0x38] sm:$0xff]
        %v817 = vld [vmem:[#allocation9 + $0x40] sm:$0xff]
        %v818 = vld [vmem:[#allocation9 + $0x48] sm:$0xff]
        %v819 = vld [vmem:[#allocation9 + $0x50] sm:$0xff]
        %v820 = vld [vmem:[#allocation9 + $0x58] sm:$0xff]
        %v821 = vld [vmem:[#allocation9 + $0x60] sm:$0xff]
        %v822 = vld [vmem:[#allocation9 + $0x68] sm:$0xff]
        %v823 = vld [vmem:[#allocation9 + $0x70] sm:$0xff]
        %v824 = vld [vmem:[#allocation9 + $0x78] sm:$0xff]
        %v825 = vld [vmem:[#allocation3 + $0x1] sm:$0xff]
        %v826 = vld [vmem:[#allocation3 + $0x11] sm:$0xff]
        %v827 = vld [vmem:[#allocation3 + $0x21] sm:$0xff]
        %v828 = vld [vmem:[#allocation3 + $0x31] sm:$0xff]
        %s829 = scalar_lea.vmem [#allocation9], 128
        %v830 = vld [vmem:[%s829] sm:$0xff]
        %v831 = vld [vmem:[%s829 + $0x8] sm:$0xff]
        %v832 = vld [vmem:[%s829 + $0x10] sm:$0xff]
        %v833 = vld [vmem:[%s829 + $0x18] sm:$0xff]
        %v834 = vld [vmem:[%s829 + $0x20] sm:$0xff]
        %v835 = vld [vmem:[%s829 + $0x28] sm:$0xff]
        %v836 = vld [vmem:[%s829 + $0x30] sm:$0xff]
        %v837 = vld [vmem:[%s829 + $0x38] sm:$0xff]
        %v838 = vld [vmem:[%s829 + $0x40] sm:$0xff]
        %v839 = vld [vmem:[%s829 + $0x48] sm:$0xff]
        %v840 = vld [vmem:[%s829 + $0x50] sm:$0xff]
        %v841 = vld [vmem:[%s829 + $0x58] sm:$0xff]
        %v842 = vld [vmem:[%s829 + $0x60] sm:$0xff]
        %v843 = vld [vmem:[%s829 + $0x68] sm:$0xff]
        %v844 = vld [vmem:[%s829 + $0x70] sm:$0xff]
        %v845 = vld [vmem:[%s829 + $0x78] sm:$0xff]
        %846 = vmatpush.msra.mxu0 %v845
        %847 = vmatpush.msra.mxu0 %v844
        %848 = vmatpush.msra.mxu0 %v843
        %849 = vmatpush.msra.mxu0 %v842
        %850 = vmatpush.msra.mxu0 %v841
        %851 = vmatpush.msra.mxu0 %v840
        %852 = vmatpush.msra.mxu0 %v839
        %853 = vmatpush.msra.mxu0 %v838
        %854 = vmatpush.msra.mxu0 %v837
        %855 = vmatpush.msra.mxu0 %v836
        %856 = vmatpush.msra.mxu0 %v835
        %857 = vmatpush.msra.mxu0 %v834
        %858 = vmatpush.msra.mxu0 %v833
        %859 = vmatpush.msra.mxu0 %v832
        %860 = vmatpush.msra.mxu0 %v831
        %861 = vmatpush.msra.mxu0 %v830
        %862 = vmatmul.f32.gmra.mxu0 %v825
        %v863 = vpop.f32.mrf.mxu0
        %v864 = vadd.f32 0.0, %v863
        %865 = vmatmul.f32.gmra.mxu0 %v826
        %v866 = vpop.f32.mrf.mxu0
        %v867 = vadd.f32 0.0, %v866
        %868 = vmatmul.f32.gmra.mxu0 %v827
        %v869 = vpop.f32.mrf.mxu0
        %v870 = vadd.f32 0.0, %v869
        %871 = vmatmul.f32.gmra.mxu0 %v828
        %v872 = vpop.f32.mrf.mxu0
        %v873 = vadd.f32 0.0, %v872
        %874 = vdwg.mxu0
        %875 = vmatpush.msra.mxu0 %v824
        %876 = vmatpush.msra.mxu0 %v823
        %877 = vmatpush.msra.mxu0 %v822
        %878 = vmatpush.msra.mxu0 %v821
        %879 = vmatpush.msra.mxu0 %v820
        %880 = vmatpush.msra.mxu0 %v819
        %881 = vmatpush.msra.mxu0 %v818
        %882 = vmatpush.msra.mxu0 %v817
        %883 = vmatpush.msra.mxu0 %v816
        %884 = vmatpush.msra.mxu0 %v815
        %885 = vmatpush.msra.mxu0 %v814
        %886 = vmatpush.msra.mxu0 %v813
        %887 = vmatpush.msra.mxu0 %v812
        %888 = vmatpush.msra.mxu0 %v811
        %889 = vmatpush.msra.mxu0 %v810
        %890 = vmatpush.msra.mxu0 %v809
        %891 = vmatmul.f32.gmra.mxu0 %v805
        %v892 = vpop.f32.mrf.mxu0
        %v893 = vadd.f32 %v864, %v892
        %894 = vmatmul.f32.gmra.mxu0 %v806
        %v895 = vpop.f32.mrf.mxu0
        %v896 = vadd.f32 %v867, %v895
        %897 = vmatmul.f32.gmra.mxu0 %v807
        %v898 = vpop.f32.mrf.mxu0
        %v899 = vadd.f32 %v870, %v898
        %900 = vmatmul.f32.gmra.mxu0 %v808
        %v901 = vpop.f32.mrf.mxu0
        %v902 = vadd.f32 %v873, %v901
        %903 = vdwg.mxu0
        %v904 = vld [vmem:[#allocation3 + $0x2] sm:$0xff]
        %v905 = vld [vmem:[#allocation3 + $0x12] sm:$0xff]
        %v906 = vld [vmem:[#allocation3 + $0x22] sm:$0xff]
        %v907 = vld [vmem:[#allocation3 + $0x32] sm:$0xff]
        %s908 = scalar_lea.vmem [#allocation9], 256
        %v909 = vld [vmem:[%s908] sm:$0xff]
        %v910 = vld [vmem:[%s908 + $0x8] sm:$0xff]
        %v911 = vld [vmem:[%s908 + $0x10] sm:$0xff]
        %v912 = vld [vmem:[%s908 + $0x18] sm:$0xff]
        %v913 = vld [vmem:[%s908 + $0x20] sm:$0xff]
        %v914 = vld [vmem:[%s908 + $0x28] sm:$0xff]
        %v915 = vld [vmem:[%s908 + $0x30] sm:$0xff]
        %v916 = vld [vmem:[%s908 + $0x38] sm:$0xff]
        %v917 = vld [vmem:[%s908 + $0x40] sm:$0xff]
        %v918 = vld [vmem:[%s908 + $0x48] sm:$0xff]
        %v919 = vld [vmem:[%s908 + $0x50] sm:$0xff]
        %v920 = vld [vmem:[%s908 + $0x58] sm:$0xff]
        %v921 = vld [vmem:[%s908 + $0x60] sm:$0xff]
        %v922 = vld [vmem:[%s908 + $0x68] sm:$0xff]
        %v923 = vld [vmem:[%s908 + $0x70] sm:$0xff]
        %v924 = vld [vmem:[%s908 + $0x78] sm:$0xff]
        %925 = vmatpush.msra.mxu0 %v924
        %926 = vmatpush.msra.mxu0 %v923
        %927 = vmatpush.msra.mxu0 %v922
        %928 = vmatpush.msra.mxu0 %v921
        %929 = vmatpush.msra.mxu0 %v920
        %930 = vmatpush.msra.mxu0 %v919
        %931 = vmatpush.msra.mxu0 %v918
        %932 = vmatpush.msra.mxu0 %v917
        %933 = vmatpush.msra.mxu0 %v916
        %934 = vmatpush.msra.mxu0 %v915
        %935 = vmatpush.msra.mxu0 %v914
        %936 = vmatpush.msra.mxu0 %v913
        %937 = vmatpush.msra.mxu0 %v912
        %938 = vmatpush.msra.mxu0 %v911
        %939 = vmatpush.msra.mxu0 %v910
        %940 = vmatpush.msra.mxu0 %v909
        %941 = vmatmul.f32.gmra.mxu0 %v904
        %v942 = vpop.f32.mrf.mxu0
        %v943 = vadd.f32 0.0, %v942
        %944 = vmatmul.f32.gmra.mxu0 %v905
        %v945 = vpop.f32.mrf.mxu0
        %v946 = vadd.f32 0.0, %v945
        %947 = vmatmul.f32.gmra.mxu0 %v906
        %v948 = vpop.f32.mrf.mxu0
        %v949 = vadd.f32 0.0, %v948
        %950 = vmatmul.f32.gmra.mxu0 %v907
        %v951 = vpop.f32.mrf.mxu0
        %v952 = vadd.f32 0.0, %v951
        %953 = vdwg.mxu0
        %v954 = vadd.f32 %v893, %v943
        %v955 = vadd.f32 %v896, %v946
        %v956 = vadd.f32 %v899, %v949
        %v957 = vadd.f32 %v902, %v952
        %v958 = vld [vmem:[%s4] sm:$0x1]
        %v960 = vperm.slane %v958, 0
        %v962 = vadd.f32 %v954, %v960
        %v963 = vadd.f32 %v955, %v960
        %v964 = vadd.f32 %v956, %v960
        %v965 = vadd.f32 %v957, %v960
        %966 = vst [vmem:[%s277] sm:$0xff] %v962
        %967 = vst [vmem:[%s277 + $0x8] sm:$0xff] %v963
        %968 = vst [vmem:[%s277 + $0x10] sm:$0xff] %v964
        %969 = vst [vmem:[%s277 + $0x18] sm:$0xff] %v965
        %s970 = sand.u32 %s141, 1
        %s971 = scalar_lea.sflag [#allocation6], %s970
        %s972 = sand.u32 %s141, 1
        %s973 = smul.addr %s972, 32
        %s974 = scalar_lea.vmem [#allocation10], %s973
        // Predicated region
        $region57: #{tpu_custom_call.1} parent=39 // pred_check
          %p975 = pneg %p151
        $region58: #{tpu_custom_call.1} parent=39 // pred_check_branch
          %977 = sbr.rel (%p975) target = $region60
        $region59: #{tpu_custom_call.1} parent=39 // pred_region
          %979 = vsyncadd %s971, 0
          %s980 = smul.addr %s23, 4
          %s981 = smul.addr %s980, 8
          %s982 = scalar_lea.hbm %s5, %s981
          %s983 = sshll.u32 %s974, 4
          %s984 = int_to_ptr.vmem [resolvable:$true] %s983
          %s985 = sshll.u32 %s982, 4
          %s986 = int_to_ptr.hbm [resolvable:$true] %s985
          %991 = dma.vmem_to_hbm [thread:$0]  %s984, 512, %s986, %s971, 128, 128, 8
        $region60: #{tpu_custom_call.1} parent=39 // pred_fallthru
          _
      $region40: #{tpu_custom_call.1} parent=5 // pred_fallthru
        _
      %p992 = scmp.le.s32.totalorder 2, %s18
      // Predicated region
      $region61: #{tpu_custom_call.1} parent=5 // pred_check
        %p993 = pneg %p992
      $region62: #{tpu_custom_call.1} parent=5 // pred_check_branch
        %995 = sbr.rel (%p993) target = $region64
      $region63: #{tpu_custom_call.1} parent=5 // pred_region
        %s996 = ssub.s32 %s18, 2
        // Predicated region
        $region65: #{tpu_custom_call.1} parent=63 // pred_check
          %p997 = pneg %p157
        $region66: #{tpu_custom_call.1} parent=63 // pred_check_branch
          %999 = sbr.rel (%p997) target = $region68
        $region67: #{tpu_custom_call.1} parent=63 // pred_region
          %s1000 = sand.u32 %s142, 1
          %s1001 = scalar_lea.sflag [#allocation6], %s1000
          %s1002 = sand.u32 %s142, 1
          %s1003 = smul.addr %s1002, 32
          %s1004 = scalar_lea.vmem [#allocation10], %s1003
          %1006 = dma.done %s1001, 512
        $region68: #{tpu_custom_call.1} parent=63 // pred_fallthru
          _
      $region64: #{tpu_custom_call.1} parent=5 // pred_fallthru
        _
    $region6: #{tpu_custom_call.1} parent=1 // loop_footer
      %s22 = sadd.s32 1, %s18
    $region7: #{tpu_custom_call.1} parent=1 // loop_footer_branch
      %17 = sbr.rel target = $region3
    $region8: #{tpu_custom_call.1} parent=1 // loop_exit
      _
    %1007 = vsyncpa [#allocation5], 1
    %s1008 = scalar_lea.sflag [#allocation5], 1
    %1009 = vsyncpa %s1008, 1
    %1010 = vsyncpa [#allocation8], 1
    %1011 = vsyncpa [#allocation6], 1
    %s1012 = scalar_lea.sflag [#allocation6], 1
    %1013 = vsyncpa %s1012, 1

</llo_original>
